<compile_context>
chip_gen: v7x
topology: tpu7x:2x2x1
jax: 0.10.0
libtpu: 0.0.40
codegen_flags: <defaults>
</compile_context>

<pallas_src>
import functools

import jax
import jax.numpy as jnp
import numpy as np
from jax import lax
from jax.experimental import pallas as pl
from jax.experimental.pallas import tpu as pltpu

LANE = 128


def _round_up(n, m):
    return ((n + m - 1) // m) * m


# ---------------------------------------------------------------------------
# Fused 3-layer MLP head:
#   out = relu(relu([conv|acct] @ W1 + b1) @ W2 + b2) @ W3 + b3
# with W1 pre-split into a conv part (F1p x H1) and an account part (AFp x H1).
#   conv_ref : (Bt, F1p) f32     acct_ref : (Bt, AFp) f32
#   w1a_ref  : (F1p, H1) bf16    w1b_ref  : (AFp, H1) bf16
#   w2_ref   : (H1, H2)  bf16    w3_ref   : (H2, Ap)  bf16
#   b_ref    : (1, H1+H2+Ap) f32 (b1 | b2 | b3-padded)
#   o_ref    : (Bt, Ap) f32      lane-dense padded logits
# ---------------------------------------------------------------------------
def dqn_mlp_kernel(conv_ref, acct_ref, w1a_ref, w1b_ref, w2_ref, w3_ref,
                   b_ref, o_ref):
    H1 = w2_ref.shape[0]
    H2 = w3_ref.shape[0]
    b1 = b_ref[:, :H1]                      # (1, H1)  lane-aligned static slice
    b2 = b_ref[:, H1:H1 + H2]               # (1, H2)
    b3 = b_ref[:, H1 + H2:]                 # (1, Ap)

    xc = conv_ref[...].astype(jnp.bfloat16)
    xa = acct_ref[...].astype(jnp.bfloat16)

    h1 = jnp.dot(xc, w1a_ref[...], preferred_element_type=jnp.float32)
    h1 = h1 + jnp.dot(xa, w1b_ref[...], preferred_element_type=jnp.float32)
    h1 = jnp.maximum(h1 + b1, 0.0)

    h2 = jnp.dot(h1.astype(jnp.bfloat16), w2_ref[...],
                 preferred_element_type=jnp.float32)
    h2 = jnp.maximum(h2 + b2, 0.0)

    out = jnp.dot(h2.astype(jnp.bfloat16), w3_ref[...],
                  preferred_element_type=jnp.float32) + b3
    o_ref[...] = out.astype(o_ref.dtype)


# ---------------------------------------------------------------------------
# One-time parameter prep: transpose, pad, split W1, cast to bf16.
# Do this ONCE per model, outside the per-step forward.
# ---------------------------------------------------------------------------
def prepare_mlp_params(params, conv_out_size, account_feats):
    w1, b1 = params["w1"], params["b1"]        # (H1, F), (H1,)   F = conv+acct
    w2, b2 = params["w2"], params["b2"]        # (H2, H1), (H2,)
    w3, b3 = params["w3"], params["b3"]        # (A,  H2), (A,)
    H1, H2, A = w1.shape[0], w2.shape[0], w3.shape[0]

    F1 = conv_out_size
    F1p = _round_up(F1, LANE)
    AFp = _round_up(account_feats, LANE)
    Ap = _round_up(A, LANE)

    w1t = w1.T.astype(jnp.float32)                                    # (F, H1)
    w1a = jnp.pad(w1t[:F1], ((0, F1p - F1), (0, 0))).astype(jnp.bfloat16)
    w1b = jnp.pad(w1t[F1:], ((0, AFp - account_feats), (0, 0))).astype(jnp.bfloat16)
    w2t = w2.T.astype(jnp.bfloat16)                                   # (H1, H2)
    w3t = jnp.pad(w3.T.astype(jnp.float32),
                  ((0, 0), (0, Ap - A))).astype(jnp.bfloat16)         # (H2, Ap)
    b_all = jnp.concatenate([
        b1.astype(jnp.float32),
        b2.astype(jnp.float32),
        jnp.pad(b3.astype(jnp.float32), (0, Ap - A)),
    ]).reshape(1, H1 + H2 + Ap)

    return {"w1a": w1a, "w1b": w1b, "w2t": w2t, "w3t": w3t, "b_all": b_all}


# ---------------------------------------------------------------------------
# Plain-JAX glue
# ---------------------------------------------------------------------------
def backbone_apply(w, x):
    # TODO(synk): `backbone` (self.cnn) is an injected external nn.Module in
    # DQNNet; stand-in here is Conv2d(C_in, 8, 3, stride=2, pad=1) + ReLU kept
    # as a plain XLA conv (not fused into the pallas_call).
    y = lax.conv_general_dilated(
        x, w, window_strides=(2, 2), padding=[(1, 1), (1, 1)],
        dimension_numbers=("NCHW", "OIHW", "NCHW"))
    return jnp.maximum(y, 0.0)


def _pick_batch_tile(B):
    """Batch tile: sublane-aligned, capped at 64, >=2 grid steps when possible."""
    B8 = _round_up(B, 8)
    if B8 <= 8:
        Bt = B8
    elif B8 <= 128:
        Bt = _round_up((B8 + 1) // 2, 8)     # >= 2 steps -> v7x megacore split
    else:
        Bt = 64                              # bound f32 intermediates (v5e vregs)
    Bp = _round_up(B8, Bt)
    return Bt, Bp


@functools.partial(jax.jit, static_argnames=("n_actions",))
def dqn_forward(x, current_account, backbone_w, mlp_prep, *, n_actions):
    """DQNNet.forward for raw_data == 'None' (cnn -> flatten -> cat -> mlp)."""
    feat = backbone_apply(backbone_w, x)                  # (B, Cb, Hb, Wb)
    B = feat.shape[0]
    conv_flat = feat.reshape(B, -1).astype(jnp.float32)   # torch.flatten(out, 1)
    acct_flat = current_account.reshape(B, -1).astype(jnp.float32)

    w1a, w1b = mlp_prep["w1a"], mlp_prep["w1b"]
    w2t, w3t, b_all = mlp_prep["w2t"], mlp_prep["w3t"], mlp_prep["b_all"]
    F1p, H1 = w1a.shape
    AFp = w1b.shape[0]
    H2, Ap = w3t.shape

    F1 = conv_flat.shape[1]
    AF = acct_flat.shape[1]
    Bt, Bp = _pick_batch_tile(B)

    # Only tiny row/col padding of the activations (no concat, no weight work).
    conv_pad = jnp.pad(conv_flat, ((0, Bp - B), (0, F1p - F1)))
    acct_pad = jnp.pad(acct_flat, ((0, Bp - B), (0, AFp - AF)))

    grid = (Bp // Bt,)

    def _const(b):
        return (0, 0)

    out_pad = pl.pallas_call(
        dqn_mlp_kernel,
        out_shape=jax.ShapeDtypeStruct((Bp, Ap), jnp.float32),
        grid=grid,
        in_specs=[
            pl.BlockSpec((Bt, F1p), lambda b: (b, 0)),
            pl.BlockSpec((Bt, AFp), lambda b: (b, 0)),
            # Grid-invariant weights/biases: single-buffer them.
            pl.BlockSpec((F1p, H1), _const, pipeline_mode=pl.Buffered(1)),
            pl.BlockSpec((AFp, H1), _const, pipeline_mode=pl.Buffered(1)),
            pl.BlockSpec((H1, H2), _const, pipeline_mode=pl.Buffered(1)),
            pl.BlockSpec((H2, Ap), _const, pipeline_mode=pl.Buffered(1)),
            pl.BlockSpec((1, H1 + H2 + Ap), _const, pipeline_mode=pl.Buffered(1)),
        ],
        out_specs=pl.BlockSpec((Bt, Ap), lambda b: (b, 0)),
        compiler_params=pltpu.CompilerParams(
            dimension_semantics=("parallel",),
            vmem_limit_bytes=32 * 1024 * 1024),
    )(conv_pad, acct_pad, w1a, w1b, w2t, w3t, b_all)

    return out_pad[:B, :n_actions]                        # (B, n_actions)


# ---------------------------------------------------------------------------
# Pure-JAX f32 reference (for verification)
# ---------------------------------------------------------------------------
def dqn_reference(x, current_account, params):
    feat = backbone_apply(params["backbone_w"], x)
    B = feat.shape[0]
    out = jnp.concatenate(
        [feat.reshape(B, -1), current_account.reshape(B, -1)], axis=1)
    hp = lax.Precision.HIGHEST
    h1 = jnp.maximum(jnp.dot(out, params["w1"].T, precision=hp) + params["b1"], 0.0)
    h2 = jnp.maximum(jnp.dot(h1, params["w2"].T, precision=hp) + params["b2"], 0.0)
    return jnp.dot(h2, params["w3"].T, precision=hp) + params["b3"]


# ---------------------------------------------------------------------------
if __name__ == "__main__":
    key = jax.random.PRNGKey(0)
    k_x, k_acct, k_bb, k1, k2, k3 = jax.random.split(key, 6)

    B, C_in, H, W = 2, 4, 16, 16          # input_shape = (4, 16, 16)
    n_actions, account_feats = 3, 3
    C_bb = 8                               # stand-in backbone output channels

    x = jax.random.normal(k_x, (B, C_in, H, W), jnp.float32)
    current_account = jax.random.normal(k_acct, (B, account_feats), jnp.float32)

    conv_out_size = C_bb * (H // 2) * (W // 2)          # get_conv_out equivalent
    con_out_size = conv_out_size + account_feats        # 512 + 3 = 515

    def linear_init(k, out_d, in_d):                    # PyTorch nn.Linear init
        kw, kb = jax.random.split(k)
        lim = 1.0 / np.sqrt(in_d)
        w = jax.random.uniform(kw, (out_d, in_d), jnp.float32, -lim, lim)
        b = jax.random.uniform(kb, (out_d,), jnp.float32, -lim, lim)
        return w, b

    w1, b1 = linear_init(k1, 512, con_out_size)          # Linear(con_out, 512)
    w2, b2 = linear_init(k2, 256, 512)                   # Linear(512, 256)
    w3, b3 = linear_init(k3, n_actions, 256)             # Linear(256, n_actions)

    params = {
        "backbone_w": jax.random.normal(k_bb, (C_bb, C_in, 3, 3), jnp.float32) * 0.1,
        "w1": w1, "b1": b1,
        "w2": w2, "b2": b2,
        "w3": w3, "b3": b3,
    }

    # One-time weight prep (transpose / pad / split / bf16) outside the forward.
    mlp_prep = prepare_mlp_params(params, conv_out_size, account_feats)
    mlp_prep = jax.tree_util.tree_map(jax.block_until_ready, mlp_prep)

    out = dqn_forward(x, current_account, params["backbone_w"], mlp_prep,
                      n_actions=n_actions)
    out = jax.block_until_ready(out)
    assert out.shape == (B, n_actions)

    # bf16 weights/activation casts => slightly looser tolerance vs f32 reference.
    ref = dqn_reference(x, current_account, params)
    np.testing.assert_allclose(np.asarray(out), np.asarray(ref),
                               rtol=5e-2, atol=1e-2)

    print("KERNEL_OK")
</pallas_src>

<mosaic_0001>
module attributes {stable_mosaic.version = 11 : i64} {
  func.func @dqn_mlp_kernel(%arg0: i32, %arg1: memref<8x512xf32, #tpu.memory_space<vmem>>, %arg2: memref<8x128xf32, #tpu.memory_space<vmem>>, %arg3: memref<512x512xbf16, #tpu.memory_space<vmem>>, %arg4: memref<128x512xbf16, #tpu.memory_space<vmem>>, %arg5: memref<512x256xbf16, #tpu.memory_space<vmem>>, %arg6: memref<256x128xbf16, #tpu.memory_space<vmem>>, %arg7: memref<1x896xf32, #tpu.memory_space<vmem>>, %arg8: memref<8x128xf32, #tpu.memory_space<vmem>>) attributes {dimension_semantics = [#tpu.dimension_semantics<parallel>], iteration_bounds = array<i64: 1>, scalar_prefetch = 0 : i64, scratch_operands = 0 : i64, tpu.core_type = #tpu.core_type<tc>, window_params = [{transform_indices = @transform_0, window_bounds = array<i64: 8, 512>}, {transform_indices = @transform_1, window_bounds = array<i64: 8, 128>}, {pipeline_mode = #tpu.pipeline_mode<synchronous>, transform_indices = @transform_2, window_bounds = array<i64: 512, 512>}, {pipeline_mode = #tpu.pipeline_mode<synchronous>, transform_indices = @transform_3, window_bounds = array<i64: 128, 512>}, {pipeline_mode = #tpu.pipeline_mode<synchronous>, transform_indices = @transform_4, window_bounds = array<i64: 512, 256>}, {pipeline_mode = #tpu.pipeline_mode<synchronous>, transform_indices = @transform_5, window_bounds = array<i64: 256, 128>}, {pipeline_mode = #tpu.pipeline_mode<synchronous>, transform_indices = @transform_6, window_bounds = array<i64: 1, 896>}, {transform_indices = @transform_7, window_bounds = array<i64: 8, 128>}]} {
    %c0 = arith.constant 0 : index
    %c0_0 = arith.constant 0 : index
    %0 = vector.load %arg7[%c0, %c0_0] : memref<1x896xf32, #tpu.memory_space<vmem>>, vector<1x512xf32>
    %c0_1 = arith.constant 0 : index
    %c512 = arith.constant 512 : index
    %1 = vector.load %arg7[%c0_1, %c512] : memref<1x896xf32, #tpu.memory_space<vmem>>, vector<1x256xf32>
    %c0_2 = arith.constant 0 : index
    %c768 = arith.constant 768 : index
    %2 = vector.load %arg7[%c0_2, %c768] : memref<1x896xf32, #tpu.memory_space<vmem>>, vector<1x128xf32>
    %c0_3 = arith.constant 0 : index
    %c0_4 = arith.constant 0 : index
    %3 = vector.load %arg1[%c0_3, %c0_4] : memref<8x512xf32, #tpu.memory_space<vmem>>, vector<8x512xf32>
    %4 = arith.truncf %3 : vector<8x512xf32> to vector<8x512xbf16>
    %c0_5 = arith.constant 0 : index
    %c0_6 = arith.constant 0 : index
    %5 = vector.load %arg2[%c0_5, %c0_6] : memref<8x128xf32, #tpu.memory_space<vmem>>, vector<8x128xf32>
    %6 = arith.truncf %5 : vector<8x128xf32> to vector<8x128xbf16>
    %c0_7 = arith.constant 0 : index
    %c0_8 = arith.constant 0 : index
    %7 = vector.load %arg3[%c0_7, %c0_8] : memref<512x512xbf16, #tpu.memory_space<vmem>>, vector<512x512xbf16>
    %cst = arith.constant dense<0.000000e+00> : vector<8x512xf32>
    %8 = tpu.matmul %4, %7, %cst {dimension_numbers = #tpu.dot_dimension_numbers<[1], [0], [0], [1], [0, 0, 1, 1], [], []>} : vector<8x512xbf16>, vector<512x512xbf16>, vector<8x512xf32> -> vector<8x512xf32>
    %c0_9 = arith.constant 0 : index
    %c0_10 = arith.constant 0 : index
    %9 = vector.load %arg4[%c0_9, %c0_10] : memref<128x512xbf16, #tpu.memory_space<vmem>>, vector<128x512xbf16>
    %cst_11 = arith.constant dense<0.000000e+00> : vector<8x512xf32>
    %10 = tpu.matmul %6, %9, %cst_11 {dimension_numbers = #tpu.dot_dimension_numbers<[1], [0], [0], [1], [0, 0, 1, 1], [], []>} : vector<8x128xbf16>, vector<128x512xbf16>, vector<8x512xf32> -> vector<8x512xf32>
    %11 = arith.addf %8, %10 : vector<8x512xf32>
    %12 = vector.broadcast %0 : vector<1x512xf32> to vector<8x512xf32>
    %13 = arith.addf %11, %12 : vector<8x512xf32>
    %cst_12 = arith.constant 0.000000e+00 : f32
    %14 = vector.broadcast %cst_12 : f32 to vector<8x512xf32>
    %15 = arith.maximumf %13, %14 : vector<8x512xf32>
    %16 = arith.truncf %15 : vector<8x512xf32> to vector<8x512xbf16>
    %c0_13 = arith.constant 0 : index
    %c0_14 = arith.constant 0 : index
    %17 = vector.load %arg5[%c0_13, %c0_14] : memref<512x256xbf16, #tpu.memory_space<vmem>>, vector<512x256xbf16>
    %cst_15 = arith.constant dense<0.000000e+00> : vector<8x256xf32>
    %18 = tpu.matmul %16, %17, %cst_15 {dimension_numbers = #tpu.dot_dimension_numbers<[1], [0], [0], [1], [0, 0, 1, 1], [], []>} : vector<8x512xbf16>, vector<512x256xbf16>, vector<8x256xf32> -> vector<8x256xf32>
    %19 = vector.broadcast %1 : vector<1x256xf32> to vector<8x256xf32>
    %20 = arith.addf %18, %19 : vector<8x256xf32>
    %cst_16 = arith.constant 0.000000e+00 : f32
    %21 = vector.broadcast %cst_16 : f32 to vector<8x256xf32>
    %22 = arith.maximumf %20, %21 : vector<8x256xf32>
    %23 = arith.truncf %22 : vector<8x256xf32> to vector<8x256xbf16>
    %c0_17 = arith.constant 0 : index
    %c0_18 = arith.constant 0 : index
    %24 = vector.load %arg6[%c0_17, %c0_18] : memref<256x128xbf16, #tpu.memory_space<vmem>>, vector<256x128xbf16>
    %cst_19 = arith.constant dense<0.000000e+00> : vector<8x128xf32>
    %25 = tpu.matmul %23, %24, %cst_19 {dimension_numbers = #tpu.dot_dimension_numbers<[1], [0], [0], [1], [0, 0, 1, 1], [], []>} : vector<8x256xbf16>, vector<256x128xbf16>, vector<8x128xf32> -> vector<8x128xf32>
    %26 = vector.broadcast %2 : vector<1x128xf32> to vector<8x128xf32>
    %27 = arith.addf %25, %26 : vector<8x128xf32>
    %c0_20 = arith.constant 0 : index
    %c0_21 = arith.constant 0 : index
    %28 = vector.load %arg8[%c0_20, %c0_21] : memref<8x128xf32, #tpu.memory_space<vmem>>, vector<8x128xf32>
    tpu.vector_store %arg8[%c0_20, %c0_21], %27 {strides = array<i32>} : memref<8x128xf32, #tpu.memory_space<vmem>>, vector<8x128xf32>,
    return
  }
  func.func @transform_0(%arg0: i32) -> (i32, i32) {
    %c0_i32 = arith.constant 0 : i32
    %c0_i32_0 = arith.constant 0 : i32
    return %arg0, %c0_i32 : i32, i32
  }
  func.func @transform_1(%arg0: i32) -> (i32, i32) {
    %c0_i32 = arith.constant 0 : i32
    %c0_i32_0 = arith.constant 0 : i32
    return %arg0, %c0_i32 : i32, i32
  }
  func.func @transform_2(%arg0: i32) -> (i32, i32) {
    %c0_i32 = arith.constant 0 : i32
    %c0_i32_0 = arith.constant 0 : i32
    %c0_i32_1 = arith.constant 0 : i32
    return %c0_i32, %c0_i32_0 : i32, i32
  }
  func.func @transform_3(%arg0: i32) -> (i32, i32) {
    %c0_i32 = arith.constant 0 : i32
    %c0_i32_0 = arith.constant 0 : i32
    %c0_i32_1 = arith.constant 0 : i32
    return %c0_i32, %c0_i32_0 : i32, i32
  }
  func.func @transform_4(%arg0: i32) -> (i32, i32) {
    %c0_i32 = arith.constant 0 : i32
    %c0_i32_0 = arith.constant 0 : i32
    %c0_i32_1 = arith.constant 0 : i32
    return %c0_i32, %c0_i32_0 : i32, i32
  }
  func.func @transform_5(%arg0: i32) -> (i32, i32) {
    %c0_i32 = arith.constant 0 : i32
    %c0_i32_0 = arith.constant 0 : i32
    %c0_i32_1 = arith.constant 0 : i32
    return %c0_i32, %c0_i32_0 : i32, i32
  }
  func.func @transform_6(%arg0: i32) -> (i32, i32) {
    %c0_i32 = arith.constant 0 : i32
    %c0_i32_0 = arith.constant 0 : i32
    %c0_i32_1 = arith.constant 0 : i32
    return %c0_i32, %c0_i32_0 : i32, i32
  }
  func.func @transform_7(%arg0: i32) -> (i32, i32) {
    %c0_i32 = arith.constant 0 : i32
    %c0_i32_0 = arith.constant 0 : i32
    return %arg0, %c0_i32 : i32, i32
  }
}

</mosaic_0001>

<llo_original>
// kernel: dqn_forward.1
$region0: #{dqn_forward.1}
  #allocation0 [shape = 'u32[]', space=smem, size = 0x4, offset = 0x4, fixed_abs, tag = 'smem constant byte address 0x4 - core index']
  #allocation1 [shape = 'u32[144,128]{1,0:T(1,128)}', space=vmem, size = 0x12000, scoped, tag = 'internal scratch']
  %s0 = inlined_call_operand.vmem [shape: f32[8,512], index: 0, kind: input, shape index: {}]
  %s1 = inlined_call_operand.vmem [shape: f32[8,128], index: 1, kind: input, shape index: {}]
  %s2 = inlined_call_operand.vmem [shape: bf16[512,512], index: 2, kind: input, shape index: {}]
  %s3 = inlined_call_operand.vmem [shape: bf16[128,512], index: 3, kind: input, shape index: {}]
  %s4 = inlined_call_operand.hbm [shape: bf16[512,256], index: 4, kind: input, shape index: {}]
  %s5 = inlined_call_operand.vmem [shape: bf16[256,128], index: 5, kind: input, shape index: {}]
  %s6 = inlined_call_operand.vmem [shape: f32[1,896], index: 6, kind: input, shape index: {}]
  %s7 = inlined_call_operand.vmem [shape: f32[8,128], index: 7, kind: output, shape index: {}]
  %s8 = sld [smem:[#allocation0]]
  $region42: #{dqn_forward.1} parent=0
    _
  %s10 = ssub.s32 1, %s8
  %s11 = scalar_select 0, %s10, %s8
  $region1: #{dqn_forward.1} parent=0
    #allocation2 [shape = 'u8[262144]{0}', space=vmem, size = 0x40000, scoped, tag = 'input window, operand 4, single buffered']
    #allocation3 [shape = 's32[1]{0}', space=sflag, size = 0x4, scoped, tag = 'scoped memory for dqn_forward.1']
    %12 = vsyncpa [#allocation3], 0
    // Predicated region
    $region2: #{dqn_forward.1} parent=1 // pred_check
      _
    $region3: #{dqn_forward.1} parent=1 // pred_check_branch
      %14 = sbr.rel (0) target = $region5
    $region4: #{dqn_forward.1} parent=1 // pred_region
      _
    $region5: #{dqn_forward.1} parent=1 // pred_fallthru
      _
    // Predicated region
    $region6: #{dqn_forward.1} parent=1 // pred_check
      _
    $region7: #{dqn_forward.1} parent=1 // pred_check_branch
      %16 = sbr.rel (0) target = $region9
    $region8: #{dqn_forward.1} parent=1 // pred_region
      _
    $region9: #{dqn_forward.1} parent=1 // pred_fallthru
      _
    // Predicated region
    $region10: #{dqn_forward.1} parent=1 // pred_check
      _
    $region11: #{dqn_forward.1} parent=1 // pred_check_branch
      %18 = sbr.rel (0) target = $region13
    $region12: #{dqn_forward.1} parent=1 // pred_region
      _
    $region13: #{dqn_forward.1} parent=1 // pred_fallthru
      _
    // Predicated region
    $region14: #{dqn_forward.1} parent=1 // pred_check
      _
    $region15: #{dqn_forward.1} parent=1 // pred_check_branch
      %20 = sbr.rel (0) target = $region17
    $region16: #{dqn_forward.1} parent=1 // pred_region
      _
    $region17: #{dqn_forward.1} parent=1 // pred_fallthru
      _
    // Predicated region
    $region18: #{dqn_forward.1} parent=1 // pred_check
      _
    $region19: #{dqn_forward.1} parent=1 // pred_check_branch
      %22 = sbr.rel (0) target = $region21
    $region20: #{dqn_forward.1} parent=1 // pred_region
      %s24 = ssub.s32 8192, 8192
      %25 = vsyncadd [#allocation3], %s24
      %s26 = sshll.u32 [#allocation2], 4
      %s27 = int_to_ptr.vmem [resolvable:$true] %s26
      %32 = dma.hbm_to_vmem [thread:$0]  %s4, 8192, %s27, [#allocation3], 128, 128, 8
    $region21: #{dqn_forward.1} parent=1 // pred_fallthru
      _
    // Predicated region
    $region22: #{dqn_forward.1} parent=1 // pred_check
      _
    $region23: #{dqn_forward.1} parent=1 // pred_check_branch
      %34 = sbr.rel (0) target = $region25
    $region24: #{dqn_forward.1} parent=1 // pred_region
      _
    $region25: #{dqn_forward.1} parent=1 // pred_fallthru
      _
    // Predicated region
    $region26: #{dqn_forward.1} parent=1 // pred_check
      _
    $region27: #{dqn_forward.1} parent=1 // pred_check_branch
      %36 = sbr.rel (0) target = $region29
    $region28: #{dqn_forward.1} parent=1 // pred_region
      _
    $region29: #{dqn_forward.1} parent=1 // pred_fallthru
      _
    // Predicated region
    $region30: #{dqn_forward.1} parent=1 // pred_check
      _
    $region31: #{dqn_forward.1} parent=1 // pred_check_branch
      %38 = sbr.rel (0) target = $region33
    $region32: #{dqn_forward.1} parent=1 // pred_region
      %39 = dma.done [#allocation3], 8192
    $region33: #{dqn_forward.1} parent=1 // pred_fallthru
      _
    %v41 = vld [vmem:[%s6] sm:$0xf]
    %v42 = vld [vmem:[%s6 + $0x4] sm:$0x3]
    %v43 = vld [vmem:[%s6 + $0x6] sm:$0x1]
    %v44 = vld [vmem:[%s0] sm:$0xff]
    %v45 = vld [vmem:[%s0 + $0x8] sm:$0xff]
    %v46 = vld [vmem:[%s0 + $0x10] sm:$0xff]
    %v47 = vld [vmem:[%s0 + $0x18] sm:$0xff]
    %v48 = vpack.c.bf16 %v44, %v44
    %v49 = vpack.c.bf16 %v45, %v45
    %v50 = vpack.c.bf16 %v46, %v46
    %v51 = vpack.c.bf16 %v47, %v47
    %v52 = vld [vmem:[%s1] sm:$0xff]
    %v53 = vpack.c.bf16 %v52, %v52
    %v54 = vld [vmem:[%s2] sm:$0xff]
    %v55 = vld [vmem:[%s2 + $0x8] sm:$0xff]
    %v56 = vld [vmem:[%s2 + $0x10] sm:$0xff]
    %v57 = vld [vmem:[%s2 + $0x18] sm:$0xff]
    %v58 = vld [vmem:[%s2 + $0x20] sm:$0xff]
    %v59 = vld [vmem:[%s2 + $0x28] sm:$0xff]
    %v60 = vld [vmem:[%s2 + $0x30] sm:$0xff]
    %v61 = vld [vmem:[%s2 + $0x38] sm:$0xff]
    %v62 = vld [vmem:[%s2 + $0x40] sm:$0xff]
    %v63 = vld [vmem:[%s2 + $0x48] sm:$0xff]
    %v64 = vld [vmem:[%s2 + $0x50] sm:$0xff]
    %v65 = vld [vmem:[%s2 + $0x58] sm:$0xff]
    %v66 = vld [vmem:[%s2 + $0x60] sm:$0xff]
    %v67 = vld [vmem:[%s2 + $0x68] sm:$0xff]
    %v68 = vld [vmem:[%s2 + $0x70] sm:$0xff]
    %v69 = vld [vmem:[%s2 + $0x78] sm:$0xff]
    %v70 = vld [vmem:[%s2 + $0x80] sm:$0xff]
    %v71 = vld [vmem:[%s2 + $0x88] sm:$0xff]
    %v72 = vld [vmem:[%s2 + $0x90] sm:$0xff]
    %v73 = vld [vmem:[%s2 + $0x98] sm:$0xff]
    %v74 = vld [vmem:[%s2 + $0xa0] sm:$0xff]
    %v75 = vld [vmem:[%s2 + $0xa8] sm:$0xff]
    %v76 = vld [vmem:[%s2 + $0xb0] sm:$0xff]
    %v77 = vld [vmem:[%s2 + $0xb8] sm:$0xff]
    %v78 = vld [vmem:[%s2 + $0xc0] sm:$0xff]
    %v79 = vld [vmem:[%s2 + $0xc8] sm:$0xff]
    %v80 = vld [vmem:[%s2 + $0xd0] sm:$0xff]
    %v81 = vld [vmem:[%s2 + $0xd8] sm:$0xff]
    %v82 = vld [vmem:[%s2 + $0xe0] sm:$0xff]
    %v83 = vld [vmem:[%s2 + $0xe8] sm:$0xff]
    %v84 = vld [vmem:[%s2 + $0xf0] sm:$0xff]
    %v85 = vld [vmem:[%s2 + $0xf8] sm:$0xff]
    %v86 = vld [vmem:[%s2 + $0x100] sm:$0xff]
    %v87 = vld [vmem:[%s2 + $0x108] sm:$0xff]
    %v88 = vld [vmem:[%s2 + $0x110] sm:$0xff]
    %v89 = vld [vmem:[%s2 + $0x118] sm:$0xff]
    %v90 = vld [vmem:[%s2 + $0x120] sm:$0xff]
    %v91 = vld [vmem:[%s2 + $0x128] sm:$0xff]
    %v92 = vld [vmem:[%s2 + $0x130] sm:$0xff]
    %v93 = vld [vmem:[%s2 + $0x138] sm:$0xff]
    %v94 = vld [vmem:[%s2 + $0x140] sm:$0xff]
    %v95 = vld [vmem:[%s2 + $0x148] sm:$0xff]
    %v96 = vld [vmem:[%s2 + $0x150] sm:$0xff]
    %v97 = vld [vmem:[%s2 + $0x158] sm:$0xff]
    %v98 = vld [vmem:[%s2 + $0x160] sm:$0xff]
    %v99 = vld [vmem:[%s2 + $0x168] sm:$0xff]
    %v100 = vld [vmem:[%s2 + $0x170] sm:$0xff]
    %v101 = vld [vmem:[%s2 + $0x178] sm:$0xff]
    %v102 = vld [vmem:[%s2 + $0x180] sm:$0xff]
    %v103 = vld [vmem:[%s2 + $0x188] sm:$0xff]
    %v104 = vld [vmem:[%s2 + $0x190] sm:$0xff]
    %v105 = vld [vmem:[%s2 + $0x198] sm:$0xff]
    %v106 = vld [vmem:[%s2 + $0x1a0] sm:$0xff]
    %v107 = vld [vmem:[%s2 + $0x1a8] sm:$0xff]
    %v108 = vld [vmem:[%s2 + $0x1b0] sm:$0xff]
    %v109 = vld [vmem:[%s2 + $0x1b8] sm:$0xff]
    %v110 = vld [vmem:[%s2 + $0x1c0] sm:$0xff]
    %v111 = vld [vmem:[%s2 + $0x1c8] sm:$0xff]
    %v112 = vld [vmem:[%s2 + $0x1d0] sm:$0xff]
    %v113 = vld [vmem:[%s2 + $0x1d8] sm:$0xff]
    %v114 = vld [vmem:[%s2 + $0x1e0] sm:$0xff]
    %v115 = vld [vmem:[%s2 + $0x1e8] sm:$0xff]
    %v116 = vld [vmem:[%s2 + $0x1f0] sm:$0xff]
    %v117 = vld [vmem:[%s2 + $0x1f8] sm:$0xff]
    %v118 = vld [vmem:[%s2 + $0x200] sm:$0xff]
    %v119 = vld [vmem:[%s2 + $0x208] sm:$0xff]
    %v120 = vld [vmem:[%s2 + $0x210] sm:$0xff]
    %v121 = vld [vmem:[%s2 + $0x218] sm:$0xff]
    %v122 = vld [vmem:[%s2 + $0x220] sm:$0xff]
    %v123 = vld [vmem:[%s2 + $0x228] sm:$0xff]
    %v124 = vld [vmem:[%s2 + $0x230] sm:$0xff]
    %v125 = vld [vmem:[%s2 + $0x238] sm:$0xff]
    %v126 = vld [vmem:[%s2 + $0x240] sm:$0xff]
    %v127 = vld [vmem:[%s2 + $0x248] sm:$0xff]
    %v128 = vld [vmem:[%s2 + $0x250] sm:$0xff]
    %v129 = vld [vmem:[%s2 + $0x258] sm:$0xff]
    %v130 = vld [vmem:[%s2 + $0x260] sm:$0xff]
    %v131 = vld [vmem:[%s2 + $0x268] sm:$0xff]
    %v132 = vld [vmem:[%s2 + $0x270] sm:$0xff]
    %v133 = vld [vmem:[%s2 + $0x278] sm:$0xff]
    %v134 = vld [vmem:[%s2 + $0x280] sm:$0xff]
    %v135 = vld [vmem:[%s2 + $0x288] sm:$0xff]
    %v136 = vld [vmem:[%s2 + $0x290] sm:$0xff]
    %v137 = vld [vmem:[%s2 + $0x298] sm:$0xff]
    %v138 = vld [vmem:[%s2 + $0x2a0] sm:$0xff]
    %v139 = vld [vmem:[%s2 + $0x2a8] sm:$0xff]
    %v140 = vld [vmem:[%s2 + $0x2b0] sm:$0xff]
    %v141 = vld [vmem:[%s2 + $0x2b8] sm:$0xff]
    %v142 = vld [vmem:[%s2 + $0x2c0] sm:$0xff]
    %v143 = vld [vmem:[%s2 + $0x2c8] sm:$0xff]
    %v144 = vld [vmem:[%s2 + $0x2d0] sm:$0xff]
    %v145 = vld [vmem:[%s2 + $0x2d8] sm:$0xff]
    %v146 = vld [vmem:[%s2 + $0x2e0] sm:$0xff]
    %v147 = vld [vmem:[%s2 + $0x2e8] sm:$0xff]
    %v148 = vld [vmem:[%s2 + $0x2f0] sm:$0xff]
    %v149 = vld [vmem:[%s2 + $0x2f8] sm:$0xff]
    %v150 = vld [vmem:[%s2 + $0x300] sm:$0xff]
    %v151 = vld [vmem:[%s2 + $0x308] sm:$0xff]
    %v152 = vld [vmem:[%s2 + $0x310] sm:$0xff]
    %v153 = vld [vmem:[%s2 + $0x318] sm:$0xff]
    %v154 = vld [vmem:[%s2 + $0x320] sm:$0xff]
    %v155 = vld [vmem:[%s2 + $0x328] sm:$0xff]
    %v156 = vld [vmem:[%s2 + $0x330] sm:$0xff]
    %v157 = vld [vmem:[%s2 + $0x338] sm:$0xff]
    %v158 = vld [vmem:[%s2 + $0x340] sm:$0xff]
    %v159 = vld [vmem:[%s2 + $0x348] sm:$0xff]
    %v160 = vld [vmem:[%s2 + $0x350] sm:$0xff]
    %v161 = vld [vmem:[%s2 + $0x358] sm:$0xff]
    %v162 = vld [vmem:[%s2 + $0x360] sm:$0xff]
    %v163 = vld [vmem:[%s2 + $0x368] sm:$0xff]
    %v164 = vld [vmem:[%s2 + $0x370] sm:$0xff]
    %v165 = vld [vmem:[%s2 + $0x378] sm:$0xff]
    %v166 = vld [vmem:[%s2 + $0x380] sm:$0xff]
    %v167 = vld [vmem:[%s2 + $0x388] sm:$0xff]
    %v168 = vld [vmem:[%s2 + $0x390] sm:$0xff]
    %v169 = vld [vmem:[%s2 + $0x398] sm:$0xff]
    %v170 = vld [vmem:[%s2 + $0x3a0] sm:$0xff]
    %v171 = vld [vmem:[%s2 + $0x3a8] sm:$0xff]
    %v172 = vld [vmem:[%s2 + $0x3b0] sm:$0xff]
    %v173 = vld [vmem:[%s2 + $0x3b8] sm:$0xff]
    %v174 = vld [vmem:[%s2 + $0x3c0] sm:$0xff]
    %v175 = vld [vmem:[%s2 + $0x3c8] sm:$0xff]
    %v176 = vld [vmem:[%s2 + $0x3d0] sm:$0xff]
    %v177 = vld [vmem:[%s2 + $0x3d8] sm:$0xff]
    %v178 = vld [vmem:[%s2 + $0x3e0] sm:$0xff]
    %v179 = vld [vmem:[%s2 + $0x3e8] sm:$0xff]
    %v180 = vld [vmem:[%s2 + $0x3f0] sm:$0xff]
    %v181 = vld [vmem:[%s2 + $0x3f8] sm:$0xff]
    %v182 = vld [vmem:[%s3] sm:$0xff]
    %v183 = vld [vmem:[%s3 + $0x8] sm:$0xff]
    %v184 = vld [vmem:[%s3 + $0x10] sm:$0xff]
    %v185 = vld [vmem:[%s3 + $0x18] sm:$0xff]
    %v186 = vld [vmem:[%s3 + $0x20] sm:$0xff]
    %v187 = vld [vmem:[%s3 + $0x28] sm:$0xff]
    %v188 = vld [vmem:[%s3 + $0x30] sm:$0xff]
    %v189 = vld [vmem:[%s3 + $0x38] sm:$0xff]
    %v190 = vld [vmem:[%s3 + $0x40] sm:$0xff]
    %v191 = vld [vmem:[%s3 + $0x48] sm:$0xff]
    %v192 = vld [vmem:[%s3 + $0x50] sm:$0xff]
    %v193 = vld [vmem:[%s3 + $0x58] sm:$0xff]
    %v194 = vld [vmem:[%s3 + $0x60] sm:$0xff]
    %v195 = vld [vmem:[%s3 + $0x68] sm:$0xff]
    %v196 = vld [vmem:[%s3 + $0x70] sm:$0xff]
    %v197 = vld [vmem:[%s3 + $0x78] sm:$0xff]
    %v198 = vld [vmem:[%s3 + $0x80] sm:$0xff]
    %v199 = vld [vmem:[%s3 + $0x88] sm:$0xff]
    %v200 = vld [vmem:[%s3 + $0x90] sm:$0xff]
    %v201 = vld [vmem:[%s3 + $0x98] sm:$0xff]
    %v202 = vld [vmem:[%s3 + $0xa0] sm:$0xff]
    %v203 = vld [vmem:[%s3 + $0xa8] sm:$0xff]
    %v204 = vld [vmem:[%s3 + $0xb0] sm:$0xff]
    %v205 = vld [vmem:[%s3 + $0xb8] sm:$0xff]
    %v206 = vld [vmem:[%s3 + $0xc0] sm:$0xff]
    %v207 = vld [vmem:[%s3 + $0xc8] sm:$0xff]
    %v208 = vld [vmem:[%s3 + $0xd0] sm:$0xff]
    %v209 = vld [vmem:[%s3 + $0xd8] sm:$0xff]
    %v210 = vld [vmem:[%s3 + $0xe0] sm:$0xff]
    %v211 = vld [vmem:[%s3 + $0xe8] sm:$0xff]
    %v212 = vld [vmem:[%s3 + $0xf0] sm:$0xff]
    %v213 = vld [vmem:[%s3 + $0xf8] sm:$0xff]
    %v246 = vunpack.c.l.b16 %v182
    %v247 = vunpack.c.h.b16 %v182
    %v248 = vunpack.c.l.b16 %v183
    %v249 = vunpack.c.h.b16 %v183
    %v250 = vunpack.c.l.b16 %v184
    %v251 = vunpack.c.h.b16 %v184
    %v252 = vunpack.c.l.b16 %v185
    %v253 = vunpack.c.h.b16 %v185
    %v254 = vunpack.c.l.b16 %v186
    %v255 = vunpack.c.h.b16 %v186
    %v256 = vunpack.c.l.b16 %v187
    %v257 = vunpack.c.h.b16 %v187
    %v258 = vunpack.c.l.b16 %v188
    %v259 = vunpack.c.h.b16 %v188
    %v260 = vunpack.c.l.b16 %v189
    %v261 = vunpack.c.h.b16 %v189
    %v262 = vunpack.c.l.b16 %v190
    %v263 = vunpack.c.h.b16 %v190
    %v264 = vunpack.c.l.b16 %v191
    %v265 = vunpack.c.h.b16 %v191
    %v266 = vunpack.c.l.b16 %v192
    %v267 = vunpack.c.h.b16 %v192
    %v268 = vunpack.c.l.b16 %v193
    %v269 = vunpack.c.h.b16 %v193
    %v270 = vunpack.c.l.b16 %v194
    %v271 = vunpack.c.h.b16 %v194
    %v272 = vunpack.c.l.b16 %v195
    %v273 = vunpack.c.h.b16 %v195
    %v274 = vunpack.c.l.b16 %v196
    %v275 = vunpack.c.h.b16 %v196
    %v276 = vunpack.c.l.b16 %v197
    %v277 = vunpack.c.h.b16 %v197
    %v278 = vunpack.c.l.b16 %v198
    %v279 = vunpack.c.h.b16 %v198
    %v280 = vunpack.c.l.b16 %v199
    %v281 = vunpack.c.h.b16 %v199
    %v282 = vunpack.c.l.b16 %v200
    %v283 = vunpack.c.h.b16 %v200
    %v284 = vunpack.c.l.b16 %v201
    %v285 = vunpack.c.h.b16 %v201
    %v286 = vunpack.c.l.b16 %v202
    %v287 = vunpack.c.h.b16 %v202
    %v288 = vunpack.c.l.b16 %v203
    %v289 = vunpack.c.h.b16 %v203
    %v290 = vunpack.c.l.b16 %v204
    %v291 = vunpack.c.h.b16 %v204
    %v292 = vunpack.c.l.b16 %v205
    %v293 = vunpack.c.h.b16 %v205
    %v294 = vunpack.c.l.b16 %v206
    %v295 = vunpack.c.h.b16 %v206
    %v296 = vunpack.c.l.b16 %v207
    %v297 = vunpack.c.h.b16 %v207
    %v298 = vunpack.c.l.b16 %v208
    %v299 = vunpack.c.h.b16 %v208
    %v300 = vunpack.c.l.b16 %v209
    %v301 = vunpack.c.h.b16 %v209
    %v302 = vunpack.c.l.b16 %v210
    %v303 = vunpack.c.h.b16 %v210
    %v304 = vunpack.c.l.b16 %v211
    %v305 = vunpack.c.h.b16 %v211
    %v306 = vunpack.c.l.b16 %v212
    %v307 = vunpack.c.h.b16 %v212
    %v308 = vunpack.c.l.b16 %v213
    %v309 = vunpack.c.h.b16 %v213
    %v310 = vpack.c.b16 %v250, %v246
    %v311 = vpack.c.b16 %v251, %v247
    %v312 = vpack.c.b16 %v252, %v248
    %v313 = vpack.c.b16 %v253, %v249
    %v314 = vpack.c.b16 %v258, %v254
    %v315 = vpack.c.b16 %v259, %v255
    %v316 = vpack.c.b16 %v260, %v256
    %v317 = vpack.c.b16 %v261, %v257
    %v318 = vpack.c.b16 %v266, %v262
    %v319 = vpack.c.b16 %v267, %v263
    %v320 = vpack.c.b16 %v268, %v264
    %v321 = vpack.c.b16 %v269, %v265
    %v322 = vpack.c.b16 %v274, %v270
    %v323 = vpack.c.b16 %v275, %v271
    %v324 = vpack.c.b16 %v276, %v272
    %v325 = vpack.c.b16 %v277, %v273
    %v326 = vpack.c.b16 %v282, %v278
    %v327 = vpack.c.b16 %v283, %v279
    %v328 = vpack.c.b16 %v284, %v280
    %v329 = vpack.c.b16 %v285, %v281
    %v330 = vpack.c.b16 %v290, %v286
    %v331 = vpack.c.b16 %v291, %v287
    %v332 = vpack.c.b16 %v292, %v288
    %v333 = vpack.c.b16 %v293, %v289
    %v334 = vpack.c.b16 %v298, %v294
    %v335 = vpack.c.b16 %v299, %v295
    %v336 = vpack.c.b16 %v300, %v296
    %v337 = vpack.c.b16 %v301, %v297
    %v338 = vpack.c.b16 %v306, %v302
    %v339 = vpack.c.b16 %v307, %v303
    %v340 = vpack.c.b16 %v308, %v304
    %v341 = vpack.c.b16 %v309, %v305
    %374 = vmatprep.subr.bf16.mxu0 %v311
    %375 = vmatpush1.bf16.msra.mxu0 %v310
    %376 = vmatprep.subr.bf16.mxu0 %v315
    %377 = vmatpush1.bf16.msra.mxu0 %v314
    %378 = vmatprep.subr.bf16.mxu0 %v319
    %379 = vmatpush1.bf16.msra.mxu0 %v318
    %380 = vmatprep.subr.bf16.mxu0 %v323
    %381 = vmatpush1.bf16.msra.mxu0 %v322
    %382 = vmatprep.subr.bf16.mxu0 %v327
    %383 = vmatpush1.bf16.msra.mxu0 %v326
    %384 = vmatprep.subr.bf16.mxu0 %v331
    %385 = vmatpush1.bf16.msra.mxu0 %v330
    %386 = vmatprep.subr.bf16.mxu0 %v335
    %387 = vmatpush1.bf16.msra.mxu0 %v334
    %388 = vmatprep.subr.bf16.mxu0 %v339
    %389 = vmatpush1.bf16.msra.mxu0 %v338
    %390 = vmatprep.subr.bf16.mxu0 0
    %391 = vmatpush1.bf16.msra.mxu0 0
    %392 = vmatprep.subr.bf16.mxu0 0
    %393 = vmatpush1.bf16.msra.mxu0 0
    %394 = vmatprep.subr.bf16.mxu0 0
    %395 = vmatpush1.bf16.msra.mxu0 0
    %396 = vmatprep.subr.bf16.mxu0 0
    %397 = vmatpush1.bf16.msra.mxu0 0
    %398 = vmatprep.subr.bf16.mxu0 0
    %399 = vmatpush1.bf16.msra.mxu0 0
    %400 = vmatprep.subr.bf16.mxu0 0
    %401 = vmatpush1.bf16.msra.mxu0 0
    %402 = vmatprep.subr.bf16.mxu0 0
    %403 = vmatpush1.bf16.msra.mxu0 0
    %404 = vmatprep.subr.bf16.mxu0 0
    %405 = vmatpush1.bf16.msra.mxu0 0
    %406 = vmatprep.mubr.bf16.mxu0 0
    %407 = vmatmul.mubr.bf16.gmra.mrb[0].mxu0 %v53
    %v408 = vpop.f32.mrb[0].mxu0
    %v409 = vadd.f32 0.0, %v408
    %v410 = vpop.f32.mrb[0].mxu0
    %v411 = vadd.f32 0.0, %v410
    %v412 = vpop.f32.mrb[0].mxu0
    %v413 = vpop.f32.mrb[0].mxu0
    %414 = vdwg.mxu0
    %415 = vmatprep.subr.bf16.mxu0 %v313
    %416 = vmatpush1.bf16.msra.mxu0 %v312
    %417 = vmatprep.subr.bf16.mxu0 %v317
    %418 = vmatpush1.bf16.msra.mxu0 %v316
    %419 = vmatprep.subr.bf16.mxu0 %v321
    %420 = vmatpush1.bf16.msra.mxu0 %v320
    %421 = vmatprep.subr.bf16.mxu0 %v325
    %422 = vmatpush1.bf16.msra.mxu0 %v324
    %423 = vmatprep.subr.bf16.mxu0 %v329
    %424 = vmatpush1.bf16.msra.mxu0 %v328
    %425 = vmatprep.subr.bf16.mxu0 %v333
    %426 = vmatpush1.bf16.msra.mxu0 %v332
    %427 = vmatprep.subr.bf16.mxu0 %v337
    %428 = vmatpush1.bf16.msra.mxu0 %v336
    %429 = vmatprep.subr.bf16.mxu0 %v341
    %430 = vmatpush1.bf16.msra.mxu0 %v340
    %431 = vmatprep.subr.bf16.mxu0 0
    %432 = vmatpush1.bf16.msra.mxu0 0
    %433 = vmatprep.subr.bf16.mxu0 0
    %434 = vmatpush1.bf16.msra.mxu0 0
    %435 = vmatprep.subr.bf16.mxu0 0
    %436 = vmatpush1.bf16.msra.mxu0 0
    %437 = vmatprep.subr.bf16.mxu0 0
    %438 = vmatpush1.bf16.msra.mxu0 0
    %439 = vmatprep.subr.bf16.mxu0 0
    %440 = vmatpush1.bf16.msra.mxu0 0
    %441 = vmatprep.subr.bf16.mxu0 0
    %442 = vmatpush1.bf16.msra.mxu0 0
    %443 = vmatprep.subr.bf16.mxu0 0
    %444 = vmatpush1.bf16.msra.mxu0 0
    %445 = vmatprep.subr.bf16.mxu0 0
    %446 = vmatpush1.bf16.msra.mxu0 0
    %447 = vmatprep.mubr.bf16.mxu0 0
    %448 = vmatmul.mubr.bf16.gmra.mrb[0].mxu0 %v53
    %v449 = vpop.f32.mrb[0].mxu0
    %v450 = vadd.f32 0.0, %v449
    %v451 = vpop.f32.mrb[0].mxu0
    %v452 = vadd.f32 0.0, %v451
    %v453 = vpop.f32.mrb[0].mxu0
    %v454 = vpop.f32.mrb[0].mxu0
    %455 = vdwg.mxu0
    %v584 = vunpack.c.l.b16 %v54
    %v585 = vunpack.c.h.b16 %v54
    %v586 = vunpack.c.l.b16 %v55
    %v587 = vunpack.c.h.b16 %v55
    %v588 = vunpack.c.l.b16 %v56
    %v589 = vunpack.c.h.b16 %v56
    %v590 = vunpack.c.l.b16 %v57
    %v591 = vunpack.c.h.b16 %v57
    %v592 = vunpack.c.l.b16 %v58
    %v593 = vunpack.c.h.b16 %v58
    %v594 = vunpack.c.l.b16 %v59
    %v595 = vunpack.c.h.b16 %v59
    %v596 = vunpack.c.l.b16 %v60
    %v597 = vunpack.c.h.b16 %v60
    %v598 = vunpack.c.l.b16 %v61
    %v599 = vunpack.c.h.b16 %v61
    %v600 = vunpack.c.l.b16 %v62
    %v601 = vunpack.c.h.b16 %v62
    %v602 = vunpack.c.l.b16 %v63
    %v603 = vunpack.c.h.b16 %v63
    %v604 = vunpack.c.l.b16 %v64
    %v605 = vunpack.c.h.b16 %v64
    %v606 = vunpack.c.l.b16 %v65
    %v607 = vunpack.c.h.b16 %v65
    %v608 = vunpack.c.l.b16 %v66
    %v609 = vunpack.c.h.b16 %v66
    %v610 = vunpack.c.l.b16 %v67
    %v611 = vunpack.c.h.b16 %v67
    %v612 = vunpack.c.l.b16 %v68
    %v613 = vunpack.c.h.b16 %v68
    %v614 = vunpack.c.l.b16 %v69
    %v615 = vunpack.c.h.b16 %v69
    %v616 = vunpack.c.l.b16 %v70
    %v617 = vunpack.c.h.b16 %v70
    %v618 = vunpack.c.l.b16 %v71
    %v619 = vunpack.c.h.b16 %v71
    %v620 = vunpack.c.l.b16 %v72
    %v621 = vunpack.c.h.b16 %v72
    %v622 = vunpack.c.l.b16 %v73
    %v623 = vunpack.c.h.b16 %v73
    %v624 = vunpack.c.l.b16 %v74
    %v625 = vunpack.c.h.b16 %v74
    %v626 = vunpack.c.l.b16 %v75
    %v627 = vunpack.c.h.b16 %v75
    %v628 = vunpack.c.l.b16 %v76
    %v629 = vunpack.c.h.b16 %v76
    %v630 = vunpack.c.l.b16 %v77
    %v631 = vunpack.c.h.b16 %v77
    %v632 = vunpack.c.l.b16 %v78
    %v633 = vunpack.c.h.b16 %v78
    %v634 = vunpack.c.l.b16 %v79
    %v635 = vunpack.c.h.b16 %v79
    %v636 = vunpack.c.l.b16 %v80
    %v637 = vunpack.c.h.b16 %v80
    %v638 = vunpack.c.l.b16 %v81
    %v639 = vunpack.c.h.b16 %v81
    %v640 = vunpack.c.l.b16 %v82
    %v641 = vunpack.c.h.b16 %v82
    %v642 = vunpack.c.l.b16 %v83
    %v643 = vunpack.c.h.b16 %v83
    %v644 = vunpack.c.l.b16 %v84
    %v645 = vunpack.c.h.b16 %v84
    %v646 = vunpack.c.l.b16 %v85
    %v647 = vunpack.c.h.b16 %v85
    %v648 = vunpack.c.l.b16 %v86
    %v649 = vunpack.c.h.b16 %v86
    %v650 = vunpack.c.l.b16 %v87
    %v651 = vunpack.c.h.b16 %v87
    %v652 = vunpack.c.l.b16 %v88
    %v653 = vunpack.c.h.b16 %v88
    %v654 = vunpack.c.l.b16 %v89
    %v655 = vunpack.c.h.b16 %v89
    %v656 = vunpack.c.l.b16 %v90
    %v657 = vunpack.c.h.b16 %v90
    %v658 = vunpack.c.l.b16 %v91
    %v659 = vunpack.c.h.b16 %v91
    %v660 = vunpack.c.l.b16 %v92
    %v661 = vunpack.c.h.b16 %v92
    %v662 = vunpack.c.l.b16 %v93
    %v663 = vunpack.c.h.b16 %v93
    %v664 = vunpack.c.l.b16 %v94
    %v665 = vunpack.c.h.b16 %v94
    %v666 = vunpack.c.l.b16 %v95
    %v667 = vunpack.c.h.b16 %v95
    %v668 = vunpack.c.l.b16 %v96
    %v669 = vunpack.c.h.b16 %v96
    %v670 = vunpack.c.l.b16 %v97
    %v671 = vunpack.c.h.b16 %v97
    %v672 = vunpack.c.l.b16 %v98
    %v673 = vunpack.c.h.b16 %v98
    %v674 = vunpack.c.l.b16 %v99
    %v675 = vunpack.c.h.b16 %v99
    %v676 = vunpack.c.l.b16 %v100
    %v677 = vunpack.c.h.b16 %v100
    %v678 = vunpack.c.l.b16 %v101
    %v679 = vunpack.c.h.b16 %v101
    %v680 = vunpack.c.l.b16 %v102
    %v681 = vunpack.c.h.b16 %v102
    %v682 = vunpack.c.l.b16 %v103
    %v683 = vunpack.c.h.b16 %v103
    %v684 = vunpack.c.l.b16 %v104
    %v685 = vunpack.c.h.b16 %v104
    %v686 = vunpack.c.l.b16 %v105
    %v687 = vunpack.c.h.b16 %v105
    %v688 = vunpack.c.l.b16 %v106
    %v689 = vunpack.c.h.b16 %v106
    %v690 = vunpack.c.l.b16 %v107
    %v691 = vunpack.c.h.b16 %v107
    %v692 = vunpack.c.l.b16 %v108
    %v693 = vunpack.c.h.b16 %v108
    %v694 = vunpack.c.l.b16 %v109
    %v695 = vunpack.c.h.b16 %v109
    %v696 = vunpack.c.l.b16 %v110
    %v697 = vunpack.c.h.b16 %v110
    %v698 = vunpack.c.l.b16 %v111
    %v699 = vunpack.c.h.b16 %v111
    %v700 = vunpack.c.l.b16 %v112
    %v701 = vunpack.c.h.b16 %v112
    %v702 = vunpack.c.l.b16 %v113
    %v703 = vunpack.c.h.b16 %v113
    %v704 = vunpack.c.l.b16 %v114
    %v705 = vunpack.c.h.b16 %v114
    %v706 = vunpack.c.l.b16 %v115
    %v707 = vunpack.c.h.b16 %v115
    %v708 = vunpack.c.l.b16 %v116
    %v709 = vunpack.c.h.b16 %v116
    %v710 = vunpack.c.l.b16 %v117
    %v711 = vunpack.c.h.b16 %v117
    %v712 = vunpack.c.l.b16 %v118
    %v713 = vunpack.c.h.b16 %v118
    %v714 = vunpack.c.l.b16 %v119
    %v715 = vunpack.c.h.b16 %v119
    %v716 = vunpack.c.l.b16 %v120
    %v717 = vunpack.c.h.b16 %v120
    %v718 = vunpack.c.l.b16 %v121
    %v719 = vunpack.c.h.b16 %v121
    %v720 = vunpack.c.l.b16 %v122
    %v721 = vunpack.c.h.b16 %v122
    %v722 = vunpack.c.l.b16 %v123
    %v723 = vunpack.c.h.b16 %v123
    %v724 = vunpack.c.l.b16 %v124
    %v725 = vunpack.c.h.b16 %v124
    %v726 = vunpack.c.l.b16 %v125
    %v727 = vunpack.c.h.b16 %v125
    %v728 = vunpack.c.l.b16 %v126
    %v729 = vunpack.c.h.b16 %v126
    %v730 = vunpack.c.l.b16 %v127
    %v731 = vunpack.c.h.b16 %v127
    %v732 = vunpack.c.l.b16 %v128
    %v733 = vunpack.c.h.b16 %v128
    %v734 = vunpack.c.l.b16 %v129
    %v735 = vunpack.c.h.b16 %v129
    %v736 = vunpack.c.l.b16 %v130
    %v737 = vunpack.c.h.b16 %v130
    %v738 = vunpack.c.l.b16 %v131
    %v739 = vunpack.c.h.b16 %v131
    %v740 = vunpack.c.l.b16 %v132
    %v741 = vunpack.c.h.b16 %v132
    %v742 = vunpack.c.l.b16 %v133
    %v743 = vunpack.c.h.b16 %v133
    %v744 = vunpack.c.l.b16 %v134
    %v745 = vunpack.c.h.b16 %v134
    %v746 = vunpack.c.l.b16 %v135
    %v747 = vunpack.c.h.b16 %v135
    %v748 = vunpack.c.l.b16 %v136
    %v749 = vunpack.c.h.b16 %v136
    %v750 = vunpack.c.l.b16 %v137
    %v751 = vunpack.c.h.b16 %v137
    %v752 = vunpack.c.l.b16 %v138
    %v753 = vunpack.c.h.b16 %v138
    %v754 = vunpack.c.l.b16 %v139
    %v755 = vunpack.c.h.b16 %v139
    %v756 = vunpack.c.l.b16 %v140
    %v757 = vunpack.c.h.b16 %v140
    %v758 = vunpack.c.l.b16 %v141
    %v759 = vunpack.c.h.b16 %v141
    %v760 = vunpack.c.l.b16 %v142
    %v761 = vunpack.c.h.b16 %v142
    %v762 = vunpack.c.l.b16 %v143
    %v763 = vunpack.c.h.b16 %v143
    %v764 = vunpack.c.l.b16 %v144
    %v765 = vunpack.c.h.b16 %v144
    %v766 = vunpack.c.l.b16 %v145
    %v767 = vunpack.c.h.b16 %v145
    %v768 = vunpack.c.l.b16 %v146
    %v769 = vunpack.c.h.b16 %v146
    %v770 = vunpack.c.l.b16 %v147
    %v771 = vunpack.c.h.b16 %v147
    %v772 = vunpack.c.l.b16 %v148
    %v773 = vunpack.c.h.b16 %v148
    %v774 = vunpack.c.l.b16 %v149
    %v775 = vunpack.c.h.b16 %v149
    %v776 = vunpack.c.l.b16 %v150
    %v777 = vunpack.c.h.b16 %v150
    %v778 = vunpack.c.l.b16 %v151
    %v779 = vunpack.c.h.b16 %v151
    %v780 = vunpack.c.l.b16 %v152
    %v781 = vunpack.c.h.b16 %v152
    %v782 = vunpack.c.l.b16 %v153
    %v783 = vunpack.c.h.b16 %v153
    %v784 = vunpack.c.l.b16 %v154
    %v785 = vunpack.c.h.b16 %v154
    %v786 = vunpack.c.l.b16 %v155
    %v787 = vunpack.c.h.b16 %v155
    %v788 = vunpack.c.l.b16 %v156
    %v789 = vunpack.c.h.b16 %v156
    %v790 = vunpack.c.l.b16 %v157
    %v791 = vunpack.c.h.b16 %v157
    %v792 = vunpack.c.l.b16 %v158
    %v793 = vunpack.c.h.b16 %v158
    %v794 = vunpack.c.l.b16 %v159
    %v795 = vunpack.c.h.b16 %v159
    %v796 = vunpack.c.l.b16 %v160
    %v797 = vunpack.c.h.b16 %v160
    %v798 = vunpack.c.l.b16 %v161
    %v799 = vunpack.c.h.b16 %v161
    %v800 = vunpack.c.l.b16 %v162
    %v801 = vunpack.c.h.b16 %v162
    %v802 = vunpack.c.l.b16 %v163
    %v803 = vunpack.c.h.b16 %v163
    %v804 = vunpack.c.l.b16 %v164
    %v805 = vunpack.c.h.b16 %v164
    %v806 = vunpack.c.l.b16 %v165
    %v807 = vunpack.c.h.b16 %v165
    %v808 = vunpack.c.l.b16 %v166
    %v809 = vunpack.c.h.b16 %v166
    %v810 = vunpack.c.l.b16 %v167
    %v811 = vunpack.c.h.b16 %v167
    %v812 = vunpack.c.l.b16 %v168
    %v813 = vunpack.c.h.b16 %v168
    %v814 = vunpack.c.l.b16 %v169
    %v815 = vunpack.c.h.b16 %v169
    %v816 = vunpack.c.l.b16 %v170
    %v817 = vunpack.c.h.b16 %v170
    %v818 = vunpack.c.l.b16 %v171
    %v819 = vunpack.c.h.b16 %v171
    %v820 = vunpack.c.l.b16 %v172
    %v821 = vunpack.c.h.b16 %v172
    %v822 = vunpack.c.l.b16 %v173
    %v823 = vunpack.c.h.b16 %v173
    %v824 = vunpack.c.l.b16 %v174
    %v825 = vunpack.c.h.b16 %v174
    %v826 = vunpack.c.l.b16 %v175
    %v827 = vunpack.c.h.b16 %v175
    %v828 = vunpack.c.l.b16 %v176
    %v829 = vunpack.c.h.b16 %v176
    %v830 = vunpack.c.l.b16 %v177
    %v831 = vunpack.c.h.b16 %v177
    %v832 = vunpack.c.l.b16 %v178
    %v833 = vunpack.c.h.b16 %v178
    %v834 = vunpack.c.l.b16 %v179
    %v835 = vunpack.c.h.b16 %v179
    %v836 = vunpack.c.l.b16 %v180
    %v837 = vunpack.c.h.b16 %v180
    %v838 = vunpack.c.l.b16 %v181
    %v839 = vunpack.c.h.b16 %v181
    %v840 = vpack.c.b16 %v588, %v584
    %v841 = vpack.c.b16 %v589, %v585
    %v842 = vpack.c.b16 %v590, %v586
    %v843 = vpack.c.b16 %v591, %v587
    %v844 = vpack.c.b16 %v596, %v592
    %v845 = vpack.c.b16 %v597, %v593
    %v846 = vpack.c.b16 %v598, %v594
    %v847 = vpack.c.b16 %v599, %v595
    %v848 = vpack.c.b16 %v604, %v600
    %v849 = vpack.c.b16 %v605, %v601
    %v850 = vpack.c.b16 %v606, %v602
    %v851 = vpack.c.b16 %v607, %v603
    %v852 = vpack.c.b16 %v612, %v608
    %v853 = vpack.c.b16 %v613, %v609
    %v854 = vpack.c.b16 %v614, %v610
    %v855 = vpack.c.b16 %v615, %v611
    %v856 = vpack.c.b16 %v620, %v616
    %v857 = vpack.c.b16 %v621, %v617
    %v858 = vpack.c.b16 %v622, %v618
    %v859 = vpack.c.b16 %v623, %v619
    %v860 = vpack.c.b16 %v628, %v624
    %v861 = vpack.c.b16 %v629, %v625
    %v862 = vpack.c.b16 %v630, %v626
    %v863 = vpack.c.b16 %v631, %v627
    %v864 = vpack.c.b16 %v636, %v632
    %v865 = vpack.c.b16 %v637, %v633
    %v866 = vpack.c.b16 %v638, %v634
    %v867 = vpack.c.b16 %v639, %v635
    %v868 = vpack.c.b16 %v644, %v640
    %v869 = vpack.c.b16 %v645, %v641
    %v870 = vpack.c.b16 %v646, %v642
    %v871 = vpack.c.b16 %v647, %v643
    %v872 = vpack.c.b16 %v652, %v648
    %v873 = vpack.c.b16 %v653, %v649
    %v874 = vpack.c.b16 %v654, %v650
    %v875 = vpack.c.b16 %v655, %v651
    %v876 = vpack.c.b16 %v660, %v656
    %v877 = vpack.c.b16 %v661, %v657
    %v878 = vpack.c.b16 %v662, %v658
    %v879 = vpack.c.b16 %v663, %v659
    %v880 = vpack.c.b16 %v668, %v664
    %v881 = vpack.c.b16 %v669, %v665
    %v882 = vpack.c.b16 %v670, %v666
    %v883 = vpack.c.b16 %v671, %v667
    %v884 = vpack.c.b16 %v676, %v672
    %v885 = vpack.c.b16 %v677, %v673
    %v886 = vpack.c.b16 %v678, %v674
    %v887 = vpack.c.b16 %v679, %v675
    %v888 = vpack.c.b16 %v684, %v680
    %v889 = vpack.c.b16 %v685, %v681
    %v890 = vpack.c.b16 %v686, %v682
    %v891 = vpack.c.b16 %v687, %v683
    %v892 = vpack.c.b16 %v692, %v688
    %v893 = vpack.c.b16 %v693, %v689
    %v894 = vpack.c.b16 %v694, %v690
    %v895 = vpack.c.b16 %v695, %v691
    %v896 = vpack.c.b16 %v700, %v696
    %v897 = vpack.c.b16 %v701, %v697
    %v898 = vpack.c.b16 %v702, %v698
    %v899 = vpack.c.b16 %v703, %v699
    %v900 = vpack.c.b16 %v708, %v704
    %v901 = vpack.c.b16 %v709, %v705
    %v902 = vpack.c.b16 %v710, %v706
    %v903 = vpack.c.b16 %v711, %v707
    %v904 = vpack.c.b16 %v716, %v712
    %v905 = vpack.c.b16 %v717, %v713
    %v906 = vpack.c.b16 %v718, %v714
    %v907 = vpack.c.b16 %v719, %v715
    %v908 = vpack.c.b16 %v724, %v720
    %v909 = vpack.c.b16 %v725, %v721
    %v910 = vpack.c.b16 %v726, %v722
    %v911 = vpack.c.b16 %v727, %v723
    %v912 = vpack.c.b16 %v732, %v728
    %v913 = vpack.c.b16 %v733, %v729
    %v914 = vpack.c.b16 %v734, %v730
    %v915 = vpack.c.b16 %v735, %v731
    %v916 = vpack.c.b16 %v740, %v736
    %v917 = vpack.c.b16 %v741, %v737
    %v918 = vpack.c.b16 %v742, %v738
    %v919 = vpack.c.b16 %v743, %v739
    %v920 = vpack.c.b16 %v748, %v744
    %v921 = vpack.c.b16 %v749, %v745
    %v922 = vpack.c.b16 %v750, %v746
    %v923 = vpack.c.b16 %v751, %v747
    %v924 = vpack.c.b16 %v756, %v752
    %v925 = vpack.c.b16 %v757, %v753
    %v926 = vpack.c.b16 %v758, %v754
    %v927 = vpack.c.b16 %v759, %v755
    %v928 = vpack.c.b16 %v764, %v760
    %v929 = vpack.c.b16 %v765, %v761
    %v930 = vpack.c.b16 %v766, %v762
    %v931 = vpack.c.b16 %v767, %v763
    %v932 = vpack.c.b16 %v772, %v768
    %v933 = vpack.c.b16 %v773, %v769
    %v934 = vpack.c.b16 %v774, %v770
    %v935 = vpack.c.b16 %v775, %v771
    %v936 = vpack.c.b16 %v780, %v776
    %v937 = vpack.c.b16 %v781, %v777
    %v938 = vpack.c.b16 %v782, %v778
    %v939 = vpack.c.b16 %v783, %v779
    %v940 = vpack.c.b16 %v788, %v784
    %v941 = vpack.c.b16 %v789, %v785
    %v942 = vpack.c.b16 %v790, %v786
    %v943 = vpack.c.b16 %v791, %v787
    %v944 = vpack.c.b16 %v796, %v792
    %v945 = vpack.c.b16 %v797, %v793
    %v946 = vpack.c.b16 %v798, %v794
    %v947 = vpack.c.b16 %v799, %v795
    %v948 = vpack.c.b16 %v804, %v800
    %v949 = vpack.c.b16 %v805, %v801
    %v950 = vpack.c.b16 %v806, %v802
    %v951 = vpack.c.b16 %v807, %v803
    %v952 = vpack.c.b16 %v812, %v808
    %v953 = vpack.c.b16 %v813, %v809
    %v954 = vpack.c.b16 %v814, %v810
    %v955 = vpack.c.b16 %v815, %v811
    %v956 = vpack.c.b16 %v820, %v816
    %v957 = vpack.c.b16 %v821, %v817
    %v958 = vpack.c.b16 %v822, %v818
    %v959 = vpack.c.b16 %v823, %v819
    %v960 = vpack.c.b16 %v828, %v824
    %v961 = vpack.c.b16 %v829, %v825
    %v962 = vpack.c.b16 %v830, %v826
    %v963 = vpack.c.b16 %v831, %v827
    %v964 = vpack.c.b16 %v836, %v832
    %v965 = vpack.c.b16 %v837, %v833
    %v966 = vpack.c.b16 %v838, %v834
    %v967 = vpack.c.b16 %v839, %v835
    %1096 = vmatprep.subr.bf16.mxu0 %v841
    %1097 = vmatpush1.bf16.msra.mxu0 %v840
    %1098 = vmatprep.subr.bf16.mxu0 %v845
    %1099 = vmatpush1.bf16.msra.mxu0 %v844
    %1100 = vmatprep.subr.bf16.mxu0 %v849
    %1101 = vmatpush1.bf16.msra.mxu0 %v848
    %1102 = vmatprep.subr.bf16.mxu0 %v853
    %1103 = vmatpush1.bf16.msra.mxu0 %v852
    %1104 = vmatprep.subr.bf16.mxu0 %v857
    %1105 = vmatpush1.bf16.msra.mxu0 %v856
    %1106 = vmatprep.subr.bf16.mxu0 %v861
    %1107 = vmatpush1.bf16.msra.mxu0 %v860
    %1108 = vmatprep.subr.bf16.mxu0 %v865
    %1109 = vmatpush1.bf16.msra.mxu0 %v864
    %1110 = vmatprep.subr.bf16.mxu0 %v869
    %1111 = vmatpush1.bf16.msra.mxu0 %v868
    %1112 = vmatprep.subr.bf16.mxu0 %v873
    %1113 = vmatpush1.bf16.msra.mxu0 %v872
    %1114 = vmatprep.subr.bf16.mxu0 %v877
    %1115 = vmatpush1.bf16.msra.mxu0 %v876
    %1116 = vmatprep.subr.bf16.mxu0 %v881
    %1117 = vmatpush1.bf16.msra.mxu0 %v880
    %1118 = vmatprep.subr.bf16.mxu0 %v885
    %1119 = vmatpush1.bf16.msra.mxu0 %v884
    %1120 = vmatprep.subr.bf16.mxu0 %v889
    %1121 = vmatpush1.bf16.msra.mxu0 %v888
    %1122 = vmatprep.subr.bf16.mxu0 %v893
    %1123 = vmatpush1.bf16.msra.mxu0 %v892
    %1124 = vmatprep.subr.bf16.mxu0 %v897
    %1125 = vmatpush1.bf16.msra.mxu0 %v896
    %1126 = vmatprep.subr.bf16.mxu0 %v901
    %1127 = vmatpush1.bf16.msra.mxu0 %v900
    %1128 = vmatprep.mubr.bf16.mxu0 %v49
    %1129 = vmatmul.mubr.bf16.gmra.mrb[0].mxu0 %v48
    %v1130 = vpop.f32.mrb[0].mxu0
    %v1131 = vadd.f32 %v409, %v1130
    %v1132 = vpop.f32.mrb[0].mxu0
    %v1133 = vadd.f32 %v411, %v1132
    %v1134 = vpop.f32.mrb[0].mxu0
    %v1135 = vpop.f32.mrb[0].mxu0
    %1136 = vdwg.mxu0
    %1137 = vmatprep.subr.bf16.mxu0 %v905
    %1138 = vmatpush1.bf16.msra.mxu0 %v904
    %1139 = vmatprep.subr.bf16.mxu0 %v909
    %1140 = vmatpush1.bf16.msra.mxu0 %v908
    %1141 = vmatprep.subr.bf16.mxu0 %v913
    %1142 = vmatpush1.bf16.msra.mxu0 %v912
    %1143 = vmatprep.subr.bf16.mxu0 %v917
    %1144 = vmatpush1.bf16.msra.mxu0 %v916
    %1145 = vmatprep.subr.bf16.mxu0 %v921
    %1146 = vmatpush1.bf16.msra.mxu0 %v920
    %1147 = vmatprep.subr.bf16.mxu0 %v925
    %1148 = vmatpush1.bf16.msra.mxu0 %v924
    %1149 = vmatprep.subr.bf16.mxu0 %v929
    %1150 = vmatpush1.bf16.msra.mxu0 %v928
    %1151 = vmatprep.subr.bf16.mxu0 %v933
    %1152 = vmatpush1.bf16.msra.mxu0 %v932
    %1153 = vmatprep.subr.bf16.mxu0 %v937
    %1154 = vmatpush1.bf16.msra.mxu0 %v936
    %1155 = vmatprep.subr.bf16.mxu0 %v941
    %1156 = vmatpush1.bf16.msra.mxu0 %v940
    %1157 = vmatprep.subr.bf16.mxu0 %v945
    %1158 = vmatpush1.bf16.msra.mxu0 %v944
    %1159 = vmatprep.subr.bf16.mxu0 %v949
    %1160 = vmatpush1.bf16.msra.mxu0 %v948
    %1161 = vmatprep.subr.bf16.mxu0 %v953
    %1162 = vmatpush1.bf16.msra.mxu0 %v952
    %1163 = vmatprep.subr.bf16.mxu0 %v957
    %1164 = vmatpush1.bf16.msra.mxu0 %v956
    %1165 = vmatprep.subr.bf16.mxu0 %v961
    %1166 = vmatpush1.bf16.msra.mxu0 %v960
    %1167 = vmatprep.subr.bf16.mxu0 %v965
    %1168 = vmatpush1.bf16.msra.mxu0 %v964
    %1169 = vmatprep.mubr.bf16.mxu0 %v51
    %1170 = vmatmul.mubr.bf16.gmra.mrb[0].mxu0 %v50
    %v1171 = vpop.f32.mrb[0].mxu0
    %v1172 = vadd.f32 %v1131, %v1171
    %v1173 = vpop.f32.mrb[0].mxu0
    %v1174 = vadd.f32 %v1133, %v1173
    %v1175 = vpop.f32.mrb[0].mxu0
    %v1176 = vpop.f32.mrb[0].mxu0
    %1177 = vdwg.mxu0
    %1178 = vmatprep.subr.bf16.mxu0 %v843
    %1179 = vmatpush1.bf16.msra.mxu0 %v842
    %1180 = vmatprep.subr.bf16.mxu0 %v847
    %1181 = vmatpush1.bf16.msra.mxu0 %v846
    %1182 = vmatprep.subr.bf16.mxu0 %v851
    %1183 = vmatpush1.bf16.msra.mxu0 %v850
    %1184 = vmatprep.subr.bf16.mxu0 %v855
    %1185 = vmatpush1.bf16.msra.mxu0 %v854
    %1186 = vmatprep.subr.bf16.mxu0 %v859
    %1187 = vmatpush1.bf16.msra.mxu0 %v858
    %1188 = vmatprep.subr.bf16.mxu0 %v863
    %1189 = vmatpush1.bf16.msra.mxu0 %v862
    %1190 = vmatprep.subr.bf16.mxu0 %v867
    %1191 = vmatpush1.bf16.msra.mxu0 %v866
    %1192 = vmatprep.subr.bf16.mxu0 %v871
    %1193 = vmatpush1.bf16.msra.mxu0 %v870
    %1194 = vmatprep.subr.bf16.mxu0 %v875
    %1195 = vmatpush1.bf16.msra.mxu0 %v874
    %1196 = vmatprep.subr.bf16.mxu0 %v879
    %1197 = vmatpush1.bf16.msra.mxu0 %v878
    %1198 = vmatprep.subr.bf16.mxu0 %v883
    %1199 = vmatpush1.bf16.msra.mxu0 %v882
    %1200 = vmatprep.subr.bf16.mxu0 %v887
    %1201 = vmatpush1.bf16.msra.mxu0 %v886
    %1202 = vmatprep.subr.bf16.mxu0 %v891
    %1203 = vmatpush1.bf16.msra.mxu0 %v890
    %1204 = vmatprep.subr.bf16.mxu0 %v895
    %1205 = vmatpush1.bf16.msra.mxu0 %v894
    %1206 = vmatprep.subr.bf16.mxu0 %v899
    %1207 = vmatpush1.bf16.msra.mxu0 %v898
    %1208 = vmatprep.subr.bf16.mxu0 %v903
    %1209 = vmatpush1.bf16.msra.mxu0 %v902
    %1210 = vmatprep.mubr.bf16.mxu0 %v49
    %1211 = vmatmul.mubr.bf16.gmra.mrb[0].mxu0 %v48
    %v1212 = vpop.f32.mrb[0].mxu0
    %v1213 = vadd.f32 %v450, %v1212
    %v1214 = vpop.f32.mrb[0].mxu0
    %v1215 = vadd.f32 %v452, %v1214
    %v1216 = vpop.f32.mrb[0].mxu0
    %v1217 = vpop.f32.mrb[0].mxu0
    %1218 = vdwg.mxu0
    %1219 = vmatprep.subr.bf16.mxu0 %v907
    %1220 = vmatpush1.bf16.msra.mxu0 %v906
    %1221 = vmatprep.subr.bf16.mxu0 %v911
    %1222 = vmatpush1.bf16.msra.mxu0 %v910
    %1223 = vmatprep.subr.bf16.mxu0 %v915
    %1224 = vmatpush1.bf16.msra.mxu0 %v914
    %1225 = vmatprep.subr.bf16.mxu0 %v919
    %1226 = vmatpush1.bf16.msra.mxu0 %v918
    %1227 = vmatprep.subr.bf16.mxu0 %v923
    %1228 = vmatpush1.bf16.msra.mxu0 %v922
    %1229 = vmatprep.subr.bf16.mxu0 %v927
    %1230 = vmatpush1.bf16.msra.mxu0 %v926
    %1231 = vmatprep.subr.bf16.mxu0 %v931
    %1232 = vmatpush1.bf16.msra.mxu0 %v930
    %1233 = vmatprep.subr.bf16.mxu0 %v935
    %1234 = vmatpush1.bf16.msra.mxu0 %v934
    %1235 = vmatprep.subr.bf16.mxu0 %v939
    %1236 = vmatpush1.bf16.msra.mxu0 %v938
    %1237 = vmatprep.subr.bf16.mxu0 %v943
    %1238 = vmatpush1.bf16.msra.mxu0 %v942
    %1239 = vmatprep.subr.bf16.mxu0 %v947
    %1240 = vmatpush1.bf16.msra.mxu0 %v946
    %1241 = vmatprep.subr.bf16.mxu0 %v951
    %1242 = vmatpush1.bf16.msra.mxu0 %v950
    %1243 = vmatprep.subr.bf16.mxu0 %v955
    %1244 = vmatpush1.bf16.msra.mxu0 %v954
    %1245 = vmatprep.subr.bf16.mxu0 %v959
    %1246 = vmatpush1.bf16.msra.mxu0 %v958
    %1247 = vmatprep.subr.bf16.mxu0 %v963
    %1248 = vmatpush1.bf16.msra.mxu0 %v962
    %1249 = vmatprep.subr.bf16.mxu0 %v967
    %1250 = vmatpush1.bf16.msra.mxu0 %v966
    %1251 = vmatprep.mubr.bf16.mxu0 %v51
    %1252 = vmatmul.mubr.bf16.gmra.mrb[0].mxu0 %v50
    %v1253 = vpop.f32.mrb[0].mxu0
    %v1254 = vadd.f32 %v1213, %v1253
    %v1255 = vpop.f32.mrb[0].mxu0
    %v1256 = vadd.f32 %v1215, %v1255
    %v1257 = vpop.f32.mrb[0].mxu0
    %v1258 = vpop.f32.mrb[0].mxu0
    %1259 = vdwg.mxu0
    %v1261 = vlaneseq
    %v1262 = vshrl.u32 %v1261, 7
    %v1263 = vsub.s32 0, %v1262
    %v1264 = vrot.slane %v41, %v1263
    %v1265 = vlaneseq
    %v1266 = vshrl.u32 %v1265, 7
    %v1267 = vsub.s32 1, %v1266
    %v1268 = vrot.slane %v41, %v1267
    %v1269 = vlaneseq
    %v1270 = vshrl.u32 %v1269, 7
    %v1271 = vsub.s32 2, %v1270
    %v1272 = vrot.slane %v41, %v1271
    %v1273 = vlaneseq
    %v1274 = vshrl.u32 %v1273, 7
    %v1275 = vsub.s32 3, %v1274
    %v1276 = vrot.slane %v41, %v1275
    %v1281 = vadd.f32 %v1172, %v1264
    %v1282 = vadd.f32 %v1174, %v1268
    %v1283 = vadd.f32 %v1254, %v1272
    %v1284 = vadd.f32 %v1256, %v1276
    %v1285 = vmax.f32 %v1281, 0.0
    %v1286 = vmax.f32 %v1282, 0.0
    %v1287 = vmax.f32 %v1283, 0.0
    %v1288 = vmax.f32 %v1284, 0.0
    %v1289 = vpack.c.bf16 %v1285, %v1285
    %v1290 = vpack.c.bf16 %v1286, %v1286
    %v1291 = vpack.c.bf16 %v1287, %v1287
    %v1292 = vpack.c.bf16 %v1288, %v1288
    %v1293 = vld [vmem:[#allocation2] sm:$0xff]
    %v1294 = vld [vmem:[#allocation2 + $0x8] sm:$0xff]
    %v1295 = vld [vmem:[#allocation2 + $0x10] sm:$0xff]
    %v1296 = vld [vmem:[#allocation2 + $0x18] sm:$0xff]
    %v1297 = vld [vmem:[#allocation2 + $0x20] sm:$0xff]
    %v1298 = vld [vmem:[#allocation2 + $0x28] sm:$0xff]
    %v1299 = vld [vmem:[#allocation2 + $0x30] sm:$0xff]
    %v1300 = vld [vmem:[#allocation2 + $0x38] sm:$0xff]
    %v1301 = vld [vmem:[#allocation2 + $0x40] sm:$0xff]
    %v1302 = vld [vmem:[#allocation2 + $0x48] sm:$0xff]
    %v1303 = vld [vmem:[#allocation2 + $0x50] sm:$0xff]
    %v1304 = vld [vmem:[#allocation2 + $0x58] sm:$0xff]
    %v1305 = vld [vmem:[#allocation2 + $0x60] sm:$0xff]
    %v1306 = vld [vmem:[#allocation2 + $0x68] sm:$0xff]
    %v1307 = vld [vmem:[#allocation2 + $0x70] sm:$0xff]
    %v1308 = vld [vmem:[#allocation2 + $0x78] sm:$0xff]
    %v1309 = vld [vmem:[#allocation2 + $0x80] sm:$0xff]
    %v1310 = vld [vmem:[#allocation2 + $0x88] sm:$0xff]
    %v1311 = vld [vmem:[#allocation2 + $0x90] sm:$0xff]
    %v1312 = vld [vmem:[#allocation2 + $0x98] sm:$0xff]
    %v1313 = vld [vmem:[#allocation2 + $0xa0] sm:$0xff]
    %v1314 = vld [vmem:[#allocation2 + $0xa8] sm:$0xff]
    %v1315 = vld [vmem:[#allocation2 + $0xb0] sm:$0xff]
    %v1316 = vld [vmem:[#allocation2 + $0xb8] sm:$0xff]
    %v1317 = vld [vmem:[#allocation2 + $0xc0] sm:$0xff]
    %v1318 = vld [vmem:[#allocation2 + $0xc8] sm:$0xff]
    %v1319 = vld [vmem:[#allocation2 + $0xd0] sm:$0xff]
    %v1320 = vld [vmem:[#allocation2 + $0xd8] sm:$0xff]
    %v1321 = vld [vmem:[#allocation2 + $0xe0] sm:$0xff]
    %v1322 = vld [vmem:[#allocation2 + $0xe8] sm:$0xff]
    %v1323 = vld [vmem:[#allocation2 + $0xf0] sm:$0xff]
    %v1324 = vld [vmem:[#allocation2 + $0xf8] sm:$0xff]
    %v1325 = vld [vmem:[#allocation2 + $0x100] sm:$0xff]
    %v1326 = vld [vmem:[#allocation2 + $0x108] sm:$0xff]
    %v1327 = vld [vmem:[#allocation2 + $0x110] sm:$0xff]
    %v1328 = vld [vmem:[#allocation2 + $0x118] sm:$0xff]
    %v1329 = vld [vmem:[#allocation2 + $0x120] sm:$0xff]
    %v1330 = vld [vmem:[#allocation2 + $0x128] sm:$0xff]
    %v1331 = vld [vmem:[#allocation2 + $0x130] sm:$0xff]
    %v1332 = vld [vmem:[#allocation2 + $0x138] sm:$0xff]
    %v1333 = vld [vmem:[#allocation2 + $0x140] sm:$0xff]
    %v1334 = vld [vmem:[#allocation2 + $0x148] sm:$0xff]
    %v1335 = vld [vmem:[#allocation2 + $0x150] sm:$0xff]
    %v1336 = vld [vmem:[#allocation2 + $0x158] sm:$0xff]
    %v1337 = vld [vmem:[#allocation2 + $0x160] sm:$0xff]
    %v1338 = vld [vmem:[#allocation2 + $0x168] sm:$0xff]
    %v1339 = vld [vmem:[#allocation2 + $0x170] sm:$0xff]
    %v1340 = vld [vmem:[#allocation2 + $0x178] sm:$0xff]
    %v1341 = vld [vmem:[#allocation2 + $0x180] sm:$0xff]
    %v1342 = vld [vmem:[#allocation2 + $0x188] sm:$0xff]
    %v1343 = vld [vmem:[#allocation2 + $0x190] sm:$0xff]
    %v1344 = vld [vmem:[#allocation2 + $0x198] sm:$0xff]
    %v1345 = vld [vmem:[#allocation2 + $0x1a0] sm:$0xff]
    %v1346 = vld [vmem:[#allocation2 + $0x1a8] sm:$0xff]
    %v1347 = vld [vmem:[#allocation2 + $0x1b0] sm:$0xff]
    %v1348 = vld [vmem:[#allocation2 + $0x1b8] sm:$0xff]
    %v1349 = vld [vmem:[#allocation2 + $0x1c0] sm:$0xff]
    %v1350 = vld [vmem:[#allocation2 + $0x1c8] sm:$0xff]
    %v1351 = vld [vmem:[#allocation2 + $0x1d0] sm:$0xff]
    %v1352 = vld [vmem:[#allocation2 + $0x1d8] sm:$0xff]
    %v1353 = vld [vmem:[#allocation2 + $0x1e0] sm:$0xff]
    %v1354 = vld [vmem:[#allocation2 + $0x1e8] sm:$0xff]
    %v1355 = vld [vmem:[#allocation2 + $0x1f0] sm:$0xff]
    %v1356 = vld [vmem:[#allocation2 + $0x1f8] sm:$0xff]
    %v1358 = vlaneseq
    %v1359 = vshrl.u32 %v1358, 7
    %v1360 = vsub.s32 0, %v1359
    %v1361 = vrot.slane %v42, %v1360
    %v1362 = vlaneseq
    %v1363 = vshrl.u32 %v1362, 7
    %v1364 = vsub.s32 1, %v1363
    %v1365 = vrot.slane %v42, %v1364
    %v1432 = vunpack.c.l.b16 %v1293
    %v1433 = vunpack.c.h.b16 %v1293
    %v1434 = vunpack.c.l.b16 %v1294
    %v1435 = vunpack.c.h.b16 %v1294
    %v1436 = vunpack.c.l.b16 %v1295
    %v1437 = vunpack.c.h.b16 %v1295
    %v1438 = vunpack.c.l.b16 %v1296
    %v1439 = vunpack.c.h.b16 %v1296
    %v1440 = vunpack.c.l.b16 %v1297
    %v1441 = vunpack.c.h.b16 %v1297
    %v1442 = vunpack.c.l.b16 %v1298
    %v1443 = vunpack.c.h.b16 %v1298
    %v1444 = vunpack.c.l.b16 %v1299
    %v1445 = vunpack.c.h.b16 %v1299
    %v1446 = vunpack.c.l.b16 %v1300
    %v1447 = vunpack.c.h.b16 %v1300
    %v1448 = vunpack.c.l.b16 %v1301
    %v1449 = vunpack.c.h.b16 %v1301
    %v1450 = vunpack.c.l.b16 %v1302
    %v1451 = vunpack.c.h.b16 %v1302
    %v1452 = vunpack.c.l.b16 %v1303
    %v1453 = vunpack.c.h.b16 %v1303
    %v1454 = vunpack.c.l.b16 %v1304
    %v1455 = vunpack.c.h.b16 %v1304
    %v1456 = vunpack.c.l.b16 %v1305
    %v1457 = vunpack.c.h.b16 %v1305
    %v1458 = vunpack.c.l.b16 %v1306
    %v1459 = vunpack.c.h.b16 %v1306
    %v1460 = vunpack.c.l.b16 %v1307
    %v1461 = vunpack.c.h.b16 %v1307
    %v1462 = vunpack.c.l.b16 %v1308
    %v1463 = vunpack.c.h.b16 %v1308
    %v1464 = vunpack.c.l.b16 %v1309
    %v1465 = vunpack.c.h.b16 %v1309
    %v1466 = vunpack.c.l.b16 %v1310
    %v1467 = vunpack.c.h.b16 %v1310
    %v1468 = vunpack.c.l.b16 %v1311
    %v1469 = vunpack.c.h.b16 %v1311
    %v1470 = vunpack.c.l.b16 %v1312
    %v1471 = vunpack.c.h.b16 %v1312
    %v1472 = vunpack.c.l.b16 %v1313
    %v1473 = vunpack.c.h.b16 %v1313
    %v1474 = vunpack.c.l.b16 %v1314
    %v1475 = vunpack.c.h.b16 %v1314
    %v1476 = vunpack.c.l.b16 %v1315
    %v1477 = vunpack.c.h.b16 %v1315
    %v1478 = vunpack.c.l.b16 %v1316
    %v1479 = vunpack.c.h.b16 %v1316
    %v1480 = vunpack.c.l.b16 %v1317
    %v1481 = vunpack.c.h.b16 %v1317
    %v1482 = vunpack.c.l.b16 %v1318
    %v1483 = vunpack.c.h.b16 %v1318
    %v1484 = vunpack.c.l.b16 %v1319
    %v1485 = vunpack.c.h.b16 %v1319
    %v1486 = vunpack.c.l.b16 %v1320
    %v1487 = vunpack.c.h.b16 %v1320
    %v1488 = vunpack.c.l.b16 %v1321
    %v1489 = vunpack.c.h.b16 %v1321
    %v1490 = vunpack.c.l.b16 %v1322
    %v1491 = vunpack.c.h.b16 %v1322
    %v1492 = vunpack.c.l.b16 %v1323
    %v1493 = vunpack.c.h.b16 %v1323
    %v1494 = vunpack.c.l.b16 %v1324
    %v1495 = vunpack.c.h.b16 %v1324
    %v1496 = vunpack.c.l.b16 %v1325
    %v1497 = vunpack.c.h.b16 %v1325
    %v1498 = vunpack.c.l.b16 %v1326
    %v1499 = vunpack.c.h.b16 %v1326
    %v1500 = vunpack.c.l.b16 %v1327
    %v1501 = vunpack.c.h.b16 %v1327
    %v1502 = vunpack.c.l.b16 %v1328
    %v1503 = vunpack.c.h.b16 %v1328
    %v1504 = vunpack.c.l.b16 %v1329
    %v1505 = vunpack.c.h.b16 %v1329
    %v1506 = vunpack.c.l.b16 %v1330
    %v1507 = vunpack.c.h.b16 %v1330
    %v1508 = vunpack.c.l.b16 %v1331
    %v1509 = vunpack.c.h.b16 %v1331
    %v1510 = vunpack.c.l.b16 %v1332
    %v1511 = vunpack.c.h.b16 %v1332
    %v1512 = vunpack.c.l.b16 %v1333
    %v1513 = vunpack.c.h.b16 %v1333
    %v1514 = vunpack.c.l.b16 %v1334
    %v1515 = vunpack.c.h.b16 %v1334
    %v1516 = vunpack.c.l.b16 %v1335
    %v1517 = vunpack.c.h.b16 %v1335
    %v1518 = vunpack.c.l.b16 %v1336
    %v1519 = vunpack.c.h.b16 %v1336
    %v1520 = vunpack.c.l.b16 %v1337
    %v1521 = vunpack.c.h.b16 %v1337
    %v1522 = vunpack.c.l.b16 %v1338
    %v1523 = vunpack.c.h.b16 %v1338
    %v1524 = vunpack.c.l.b16 %v1339
    %v1525 = vunpack.c.h.b16 %v1339
    %v1526 = vunpack.c.l.b16 %v1340
    %v1527 = vunpack.c.h.b16 %v1340
    %v1528 = vunpack.c.l.b16 %v1341
    %v1529 = vunpack.c.h.b16 %v1341
    %v1530 = vunpack.c.l.b16 %v1342
    %v1531 = vunpack.c.h.b16 %v1342
    %v1532 = vunpack.c.l.b16 %v1343
    %v1533 = vunpack.c.h.b16 %v1343
    %v1534 = vunpack.c.l.b16 %v1344
    %v1535 = vunpack.c.h.b16 %v1344
    %v1536 = vunpack.c.l.b16 %v1345
    %v1537 = vunpack.c.h.b16 %v1345
    %v1538 = vunpack.c.l.b16 %v1346
    %v1539 = vunpack.c.h.b16 %v1346
    %v1540 = vunpack.c.l.b16 %v1347
    %v1541 = vunpack.c.h.b16 %v1347
    %v1542 = vunpack.c.l.b16 %v1348
    %v1543 = vunpack.c.h.b16 %v1348
    %v1544 = vunpack.c.l.b16 %v1349
    %v1545 = vunpack.c.h.b16 %v1349
    %v1546 = vunpack.c.l.b16 %v1350
    %v1547 = vunpack.c.h.b16 %v1350
    %v1548 = vunpack.c.l.b16 %v1351
    %v1549 = vunpack.c.h.b16 %v1351
    %v1550 = vunpack.c.l.b16 %v1352
    %v1551 = vunpack.c.h.b16 %v1352
    %v1552 = vunpack.c.l.b16 %v1353
    %v1553 = vunpack.c.h.b16 %v1353
    %v1554 = vunpack.c.l.b16 %v1354
    %v1555 = vunpack.c.h.b16 %v1354
    %v1556 = vunpack.c.l.b16 %v1355
    %v1557 = vunpack.c.h.b16 %v1355
    %v1558 = vunpack.c.l.b16 %v1356
    %v1559 = vunpack.c.h.b16 %v1356
    %v1560 = vpack.c.b16 %v1434, %v1432
    %v1561 = vpack.c.b16 %v1435, %v1433
    %v1562 = vpack.c.b16 %v1438, %v1436
    %v1563 = vpack.c.b16 %v1439, %v1437
    %v1564 = vpack.c.b16 %v1442, %v1440
    %v1565 = vpack.c.b16 %v1443, %v1441
    %v1566 = vpack.c.b16 %v1446, %v1444
    %v1567 = vpack.c.b16 %v1447, %v1445
    %v1568 = vpack.c.b16 %v1450, %v1448
    %v1569 = vpack.c.b16 %v1451, %v1449
    %v1570 = vpack.c.b16 %v1454, %v1452
    %v1571 = vpack.c.b16 %v1455, %v1453
    %v1572 = vpack.c.b16 %v1458, %v1456
    %v1573 = vpack.c.b16 %v1459, %v1457
    %v1574 = vpack.c.b16 %v1462, %v1460
    %v1575 = vpack.c.b16 %v1463, %v1461
    %v1576 = vpack.c.b16 %v1466, %v1464
    %v1577 = vpack.c.b16 %v1467, %v1465
    %v1578 = vpack.c.b16 %v1470, %v1468
    %v1579 = vpack.c.b16 %v1471, %v1469
    %v1580 = vpack.c.b16 %v1474, %v1472
    %v1581 = vpack.c.b16 %v1475, %v1473
    %v1582 = vpack.c.b16 %v1478, %v1476
    %v1583 = vpack.c.b16 %v1479, %v1477
    %v1584 = vpack.c.b16 %v1482, %v1480
    %v1585 = vpack.c.b16 %v1483, %v1481
    %v1586 = vpack.c.b16 %v1486, %v1484
    %v1587 = vpack.c.b16 %v1487, %v1485
    %v1588 = vpack.c.b16 %v1490, %v1488
    %v1589 = vpack.c.b16 %v1491, %v1489
    %v1590 = vpack.c.b16 %v1494, %v1492
    %v1591 = vpack.c.b16 %v1495, %v1493
    %v1592 = vpack.c.b16 %v1498, %v1496
    %v1593 = vpack.c.b16 %v1499, %v1497
    %v1594 = vpack.c.b16 %v1502, %v1500
    %v1595 = vpack.c.b16 %v1503, %v1501
    %v1596 = vpack.c.b16 %v1506, %v1504
    %v1597 = vpack.c.b16 %v1507, %v1505
    %v1598 = vpack.c.b16 %v1510, %v1508
    %v1599 = vpack.c.b16 %v1511, %v1509
    %v1600 = vpack.c.b16 %v1514, %v1512
    %v1601 = vpack.c.b16 %v1515, %v1513
    %v1602 = vpack.c.b16 %v1518, %v1516
    %v1603 = vpack.c.b16 %v1519, %v1517
    %v1604 = vpack.c.b16 %v1522, %v1520
    %v1605 = vpack.c.b16 %v1523, %v1521
    %v1606 = vpack.c.b16 %v1526, %v1524
    %v1607 = vpack.c.b16 %v1527, %v1525
    %v1608 = vpack.c.b16 %v1530, %v1528
    %v1609 = vpack.c.b16 %v1531, %v1529
    %v1610 = vpack.c.b16 %v1534, %v1532
    %v1611 = vpack.c.b16 %v1535, %v1533
    %v1612 = vpack.c.b16 %v1538, %v1536
    %v1613 = vpack.c.b16 %v1539, %v1537
    %v1614 = vpack.c.b16 %v1542, %v1540
    %v1615 = vpack.c.b16 %v1543, %v1541
    %v1616 = vpack.c.b16 %v1546, %v1544
    %v1617 = vpack.c.b16 %v1547, %v1545
    %v1618 = vpack.c.b16 %v1550, %v1548
    %v1619 = vpack.c.b16 %v1551, %v1549
    %v1620 = vpack.c.b16 %v1554, %v1552
    %v1621 = vpack.c.b16 %v1555, %v1553
    %v1622 = vpack.c.b16 %v1558, %v1556
    %v1623 = vpack.c.b16 %v1559, %v1557
    %1688 = vmatprep.subr.bf16.mxu0 %v1561
    %1689 = vmatpush1.bf16.msra.mxu0 %v1560
    %1690 = vmatprep.subr.bf16.mxu0 %v1563
    %1691 = vmatpush1.bf16.msra.mxu0 %v1562
    %1692 = vmatprep.subr.bf16.mxu0 %v1565
    %1693 = vmatpush1.bf16.msra.mxu0 %v1564
    %1694 = vmatprep.subr.bf16.mxu0 %v1567
    %1695 = vmatpush1.bf16.msra.mxu0 %v1566
    %1696 = vmatprep.subr.bf16.mxu0 %v1569
    %1697 = vmatpush1.bf16.msra.mxu0 %v1568
    %1698 = vmatprep.subr.bf16.mxu0 %v1571
    %1699 = vmatpush1.bf16.msra.mxu0 %v1570
    %1700 = vmatprep.subr.bf16.mxu0 %v1573
    %1701 = vmatpush1.bf16.msra.mxu0 %v1572
    %1702 = vmatprep.subr.bf16.mxu0 %v1575
    %1703 = vmatpush1.bf16.msra.mxu0 %v1574
    %1704 = vmatprep.subr.bf16.mxu0 %v1577
    %1705 = vmatpush1.bf16.msra.mxu0 %v1576
    %1706 = vmatprep.subr.bf16.mxu0 %v1579
    %1707 = vmatpush1.bf16.msra.mxu0 %v1578
    %1708 = vmatprep.subr.bf16.mxu0 %v1581
    %1709 = vmatpush1.bf16.msra.mxu0 %v1580
    %1710 = vmatprep.subr.bf16.mxu0 %v1583
    %1711 = vmatpush1.bf16.msra.mxu0 %v1582
    %1712 = vmatprep.subr.bf16.mxu0 %v1585
    %1713 = vmatpush1.bf16.msra.mxu0 %v1584
    %1714 = vmatprep.subr.bf16.mxu0 %v1587
    %1715 = vmatpush1.bf16.msra.mxu0 %v1586
    %1716 = vmatprep.subr.bf16.mxu0 %v1589
    %1717 = vmatpush1.bf16.msra.mxu0 %v1588
    %1718 = vmatprep.subr.bf16.mxu0 %v1591
    %1719 = vmatpush1.bf16.msra.mxu0 %v1590
    %1720 = vmatprep.mubr.bf16.mxu0 %v1290
    %1721 = vmatmul.mubr.bf16.gmra.mrb[0].mxu0 %v1289
    %v1722 = vpop.f32.mrb[0].mxu0
    %v1723 = vadd.f32 %v1361, %v1722
    %v1724 = vpop.f32.mrb[0].mxu0
    %v1725 = vadd.f32 %v1365, %v1724
    %v1726 = vpop.f32.mrb[0].mxu0
    %v1727 = vpop.f32.mrb[0].mxu0
    %1728 = vdwg.mxu0
    %1729 = vmatprep.subr.bf16.mxu0 %v1593
    %1730 = vmatpush1.bf16.msra.mxu0 %v1592
    %1731 = vmatprep.subr.bf16.mxu0 %v1595
    %1732 = vmatpush1.bf16.msra.mxu0 %v1594
    %1733 = vmatprep.subr.bf16.mxu0 %v1597
    %1734 = vmatpush1.bf16.msra.mxu0 %v1596
    %1735 = vmatprep.subr.bf16.mxu0 %v1599
    %1736 = vmatpush1.bf16.msra.mxu0 %v1598
    %1737 = vmatprep.subr.bf16.mxu0 %v1601
    %1738 = vmatpush1.bf16.msra.mxu0 %v1600
    %1739 = vmatprep.subr.bf16.mxu0 %v1603
    %1740 = vmatpush1.bf16.msra.mxu0 %v1602
    %1741 = vmatprep.subr.bf16.mxu0 %v1605
    %1742 = vmatpush1.bf16.msra.mxu0 %v1604
    %1743 = vmatprep.subr.bf16.mxu0 %v1607
    %1744 = vmatpush1.bf16.msra.mxu0 %v1606
    %1745 = vmatprep.subr.bf16.mxu0 %v1609
    %1746 = vmatpush1.bf16.msra.mxu0 %v1608
    %1747 = vmatprep.subr.bf16.mxu0 %v1611
    %1748 = vmatpush1.bf16.msra.mxu0 %v1610
    %1749 = vmatprep.subr.bf16.mxu0 %v1613
    %1750 = vmatpush1.bf16.msra.mxu0 %v1612
    %1751 = vmatprep.subr.bf16.mxu0 %v1615
    %1752 = vmatpush1.bf16.msra.mxu0 %v1614
    %1753 = vmatprep.subr.bf16.mxu0 %v1617
    %1754 = vmatpush1.bf16.msra.mxu0 %v1616
    %1755 = vmatprep.subr.bf16.mxu0 %v1619
    %1756 = vmatpush1.bf16.msra.mxu0 %v1618
    %1757 = vmatprep.subr.bf16.mxu0 %v1621
    %1758 = vmatpush1.bf16.msra.mxu0 %v1620
    %1759 = vmatprep.subr.bf16.mxu0 %v1623
    %1760 = vmatpush1.bf16.msra.mxu0 %v1622
    %1761 = vmatprep.mubr.bf16.mxu0 %v1292
    %1762 = vmatmul.mubr.bf16.gmra.mrb[0].mxu0 %v1291
    %v1763 = vpop.f32.mrb[0].mxu0
    %v1764 = vadd.f32 %v1723, %v1763
    %v1765 = vpop.f32.mrb[0].mxu0
    %v1766 = vadd.f32 %v1725, %v1765
    %v1767 = vpop.f32.mrb[0].mxu0
    %v1768 = vpop.f32.mrb[0].mxu0
    %1769 = vdwg.mxu0
    %v1770 = vmax.f32 %v1764, 0.0
    %v1771 = vmax.f32 %v1766, 0.0
    %v1772 = vpack.c.bf16 %v1770, %v1770
    %v1773 = vpack.c.bf16 %v1771, %v1771
    %v1774 = vld [vmem:[%s5] sm:$0xf]
    %v1775 = vld [vmem:[%s5 + $0x4] sm:$0xf]
    %v1776 = vld [vmem:[%s5 + $0x8] sm:$0xf]
    %v1777 = vld [vmem:[%s5 + $0xc] sm:$0xf]
    %v1778 = vld [vmem:[%s5 + $0x10] sm:$0xf]
    %v1779 = vld [vmem:[%s5 + $0x14] sm:$0xf]
    %v1780 = vld [vmem:[%s5 + $0x18] sm:$0xf]
    %v1781 = vld [vmem:[%s5 + $0x1c] sm:$0xf]
    %v1782 = vld [vmem:[%s5 + $0x20] sm:$0xf]
    %v1783 = vld [vmem:[%s5 + $0x24] sm:$0xf]
    %v1784 = vld [vmem:[%s5 + $0x28] sm:$0xf]
    %v1785 = vld [vmem:[%s5 + $0x2c] sm:$0xf]
    %v1786 = vld [vmem:[%s5 + $0x30] sm:$0xf]
    %v1787 = vld [vmem:[%s5 + $0x34] sm:$0xf]
    %v1788 = vld [vmem:[%s5 + $0x38] sm:$0xf]
    %v1789 = vld [vmem:[%s5 + $0x3c] sm:$0xf]
    %v1790 = vld [vmem:[%s5 + $0x40] sm:$0xf]
    %v1791 = vld [vmem:[%s5 + $0x44] sm:$0xf]
    %v1792 = vld [vmem:[%s5 + $0x48] sm:$0xf]
    %v1793 = vld [vmem:[%s5 + $0x4c] sm:$0xf]
    %v1794 = vld [vmem:[%s5 + $0x50] sm:$0xf]
    %v1795 = vld [vmem:[%s5 + $0x54] sm:$0xf]
    %v1796 = vld [vmem:[%s5 + $0x58] sm:$0xf]
    %v1797 = vld [vmem:[%s5 + $0x5c] sm:$0xf]
    %v1798 = vld [vmem:[%s5 + $0x60] sm:$0xf]
    %v1799 = vld [vmem:[%s5 + $0x64] sm:$0xf]
    %v1800 = vld [vmem:[%s5 + $0x68] sm:$0xf]
    %v1801 = vld [vmem:[%s5 + $0x6c] sm:$0xf]
    %v1802 = vld [vmem:[%s5 + $0x70] sm:$0xf]
    %v1803 = vld [vmem:[%s5 + $0x74] sm:$0xf]
    %v1804 = vld [vmem:[%s5 + $0x78] sm:$0xf]
    %v1805 = vld [vmem:[%s5 + $0x7c] sm:$0xf]
    %v1807 = vlaneseq
    %v1808 = vshrl.u32 %v1807, 7
    %v1809 = vsub.s32 0, %v1808
    %v1810 = vrot.slane %v43, %v1809
    %v1844 = vunpack.c.l.b16 %v1774
    %v1845 = vunpack.c.l.b16 %v1775
    %v1846 = vunpack.c.l.b16 %v1776
    %v1847 = vunpack.c.l.b16 %v1777
    %v1848 = vunpack.c.l.b16 %v1778
    %v1849 = vunpack.c.l.b16 %v1779
    %v1850 = vunpack.c.l.b16 %v1780
    %v1851 = vunpack.c.l.b16 %v1781
    %v1852 = vunpack.c.l.b16 %v1782
    %v1853 = vunpack.c.l.b16 %v1783
    %v1854 = vunpack.c.l.b16 %v1784
    %v1855 = vunpack.c.l.b16 %v1785
    %v1856 = vunpack.c.l.b16 %v1786
    %v1857 = vunpack.c.l.b16 %v1787
    %v1858 = vunpack.c.l.b16 %v1788
    %v1859 = vunpack.c.l.b16 %v1789
    %v1860 = vunpack.c.l.b16 %v1790
    %v1861 = vunpack.c.l.b16 %v1791
    %v1862 = vunpack.c.l.b16 %v1792
    %v1863 = vunpack.c.l.b16 %v1793
    %v1864 = vunpack.c.l.b16 %v1794
    %v1865 = vunpack.c.l.b16 %v1795
    %v1866 = vunpack.c.l.b16 %v1796
    %v1867 = vunpack.c.l.b16 %v1797
    %v1868 = vunpack.c.l.b16 %v1798
    %v1869 = vunpack.c.l.b16 %v1799
    %v1870 = vunpack.c.l.b16 %v1800
    %v1871 = vunpack.c.l.b16 %v1801
    %v1872 = vunpack.c.l.b16 %v1802
    %v1873 = vunpack.c.l.b16 %v1803
    %v1874 = vunpack.c.l.b16 %v1804
    %v1875 = vunpack.c.l.b16 %v1805
    %v1876 = vpack.c.b16 %v1845, %v1844
    %v1877 = vpack.c.b16 %v1847, %v1846
    %v1878 = vpack.c.b16 %v1849, %v1848
    %v1879 = vpack.c.b16 %v1851, %v1850
    %v1880 = vpack.c.b16 %v1853, %v1852
    %v1881 = vpack.c.b16 %v1855, %v1854
    %v1882 = vpack.c.b16 %v1857, %v1856
    %v1883 = vpack.c.b16 %v1859, %v1858
    %v1884 = vpack.c.b16 %v1861, %v1860
    %v1885 = vpack.c.b16 %v1863, %v1862
    %v1886 = vpack.c.b16 %v1865, %v1864
    %v1887 = vpack.c.b16 %v1867, %v1866
    %v1888 = vpack.c.b16 %v1869, %v1868
    %v1889 = vpack.c.b16 %v1871, %v1870
    %v1890 = vpack.c.b16 %v1873, %v1872
    %v1891 = vpack.c.b16 %v1875, %v1874
    %1908 = vmatprep.subr.bf16.mxu0 0
    %1909 = vmatpush1.bf16.msra.mxu0 %v1876
    %1910 = vmatprep.subr.bf16.mxu0 0
    %1911 = vmatpush1.bf16.msra.mxu0 %v1877
    %1912 = vmatprep.subr.bf16.mxu0 0
    %1913 = vmatpush1.bf16.msra.mxu0 %v1878
    %1914 = vmatprep.subr.bf16.mxu0 0
    %1915 = vmatpush1.bf16.msra.mxu0 %v1879
    %1916 = vmatprep.subr.bf16.mxu0 0
    %1917 = vmatpush1.bf16.msra.mxu0 %v1880
    %1918 = vmatprep.subr.bf16.mxu0 0
    %1919 = vmatpush1.bf16.msra.mxu0 %v1881
    %1920 = vmatprep.subr.bf16.mxu0 0
    %1921 = vmatpush1.bf16.msra.mxu0 %v1882
    %1922 = vmatprep.subr.bf16.mxu0 0
    %1923 = vmatpush1.bf16.msra.mxu0 %v1883
    %1924 = vmatprep.subr.bf16.mxu0 0
    %1925 = vmatpush1.bf16.msra.mxu0 %v1884
    %1926 = vmatprep.subr.bf16.mxu0 0
    %1927 = vmatpush1.bf16.msra.mxu0 %v1885
    %1928 = vmatprep.subr.bf16.mxu0 0
    %1929 = vmatpush1.bf16.msra.mxu0 %v1886
    %1930 = vmatprep.subr.bf16.mxu0 0
    %1931 = vmatpush1.bf16.msra.mxu0 %v1887
    %1932 = vmatprep.subr.bf16.mxu0 0
    %1933 = vmatpush1.bf16.msra.mxu0 %v1888
    %1934 = vmatprep.subr.bf16.mxu0 0
    %1935 = vmatpush1.bf16.msra.mxu0 %v1889
    %1936 = vmatprep.subr.bf16.mxu0 0
    %1937 = vmatpush1.bf16.msra.mxu0 %v1890
    %1938 = vmatprep.subr.bf16.mxu0 0
    %1939 = vmatpush1.bf16.msra.mxu0 %v1891
    %1940 = vmatprep.mubr.bf16.mxu0 %v1773
    %1941 = vmatmul.mubr.bf16.gmra.mrb[0].mxu0 %v1772
    %v1942 = vpop.f32.mrb[0].mxu0
    %v1943 = vadd.f32 %v1810, %v1942
    %v1944 = vpop.f32.mrb[0].mxu0
    %v1945 = vpop.f32.mrb[0].mxu0
    %v1946 = vpop.f32.mrb[0].mxu0
    %1947 = vdwg.mxu0
    %1948 = vst [vmem:[%s7] sm:$0xff] %v1943
    // Predicated region
    $region34: #{dqn_forward.1} parent=1 // pred_check
      _
    $region35: #{dqn_forward.1} parent=1 // pred_check_branch
      %1950 = sbr.rel (0) target = $region37
    $region36: #{dqn_forward.1} parent=1 // pred_region
      _
    $region37: #{dqn_forward.1} parent=1 // pred_fallthru
      _
    // Predicated region
    $region38: #{dqn_forward.1} parent=1 // pred_check
      _
    $region39: #{dqn_forward.1} parent=1 // pred_check_branch
      %1952 = sbr.rel (0) target = $region41
    $region40: #{dqn_forward.1} parent=1 // pred_region
      _
    $region41: #{dqn_forward.1} parent=1 // pred_fallthru
      _
    %1953 = vsyncpa [#allocation3], 1

</llo_original>
